<compile_context>
chip_gen: v6e
topology: v6e:2x2x1
jax: 0.10.0
libtpu: 0.0.40
codegen_flags: <defaults>
</compile_context>

<pallas_src>
import numpy as np
import jax
import jax.numpy as jnp
from jax.experimental import pallas as pl
from jax.experimental.pallas import tpu as pltpu


# ----------------------------------------------------------------------
# Host-side helpers
# ----------------------------------------------------------------------
def make_tap_masks(H, W):
    """mask[t, h*W+w] = 1 iff the (dh, dw) neighbour of (h, w) is inside the image."""
    S2 = H * W
    masks = np.zeros((9, S2), np.float32)
    offsets = []
    t = 0
    for dh in (-1, 0, 1):
        for dw in (-1, 0, 1):
            hh = np.arange(H)[:, None] + dh
            ww = np.arange(W)[None, :] + dw
            ok = ((hh >= 0) & (hh < H) & (ww >= 0) & (ww < W)).astype(np.float32)
            masks[t] = ok.reshape(S2)
            offsets.append((dh, dw))
            t += 1
    return jnp.asarray(masks), offsets


# ----------------------------------------------------------------------
# Fused DoubleConv kernel factory
# ----------------------------------------------------------------------
def make_double_conv(Cin, Cout, H, W, Cmid=None, residual=False):
    if Cmid is None:
        Cmid = Cout
    if residual:
        assert Cin == Cout, "residual DoubleConv requires in_channels == out_channels"
    S2 = H * W
    masks, offsets = make_tap_masks(H, W)
    # pltpu.roll follows np.roll semantics: out[i] = in[(i - shift) mod N].
    # We want out[s] = in[s + d] with d = dh*W + dw  =>  shift = (-d) mod S2.
    shifts = [(-(dh * W + dw)) % S2 for (dh, dw) in offsets]

    def kernel(x_ref, masks_ref, w1_ref, g1_ref, b1_ref, w2_ref, g2_ref, b2_ref,
               out_ref, stk1_ref, stk2_ref):
        # x_ref:   [1, Cin, S2]            masks_ref: [9, S2]
        # w1_ref:  [Cmid, 9*Cin]           g1/b1:     [Cmid, 1]
        # w2_ref:  [Cout, 9*Cmid]          g2/b2:     [Cout, 1]
        # out_ref: [1, Cout, S2]           stk*:      VMEM scratch [9*C, S2]
        x = x_ref[0]                                                 # [Cin, S2]

        def conv3x3(h, w, stk_ref):
            # Build the 9 shifted copies once, then ONE matmul with K = 9*C.
            c = h.shape[0]
            for t in range(9):
                if shifts[t] == 0:                                   # center tap
                    hs = h
                else:
                    hs = pltpu.roll(h, shifts[t], 1) * masks_ref[t:t + 1, :]
                stk_ref[t * c:(t + 1) * c, :] = hs
            return jnp.dot(w, stk_ref[...],                          # [Cout, S2]
                           preferred_element_type=jnp.float32)

        def groupnorm(h, g_ref, b_ref):
            # GroupNorm(1, C): normalize over all (C, H, W) of the sample, eps=1e-5.
            n = h.shape[0] * h.shape[1]
            s1 = jnp.sum(h)
            s2 = jnp.sum(h * h)
            mu = s1 / n
            var = s2 / n - mu * mu                                   # single-pass var
            return (h - mu) * jax.lax.rsqrt(var + 1e-5) * g_ref[...] + b_ref[...]

        def gelu(v):
            # exact (erf) GELU; erf via Abramowitz-Stegun 7.1.26 (max err ~1.5e-7),
            # exp goes to the EUP slot.
            z = v * 0.7071067811865476
            az = jnp.abs(z)
            tp = 1.0 / (1.0 + 0.3275911 * az)
            poly = ((((1.061405429 * tp - 1.453152027) * tp + 1.421413741) * tp
                     - 0.284496736) * tp + 0.254829592) * tp
            erf_abs = 1.0 - poly * jnp.exp(-az * az)
            erf_z = jnp.where(z >= 0.0, erf_abs, -erf_abs)
            return 0.5 * v * (1.0 + erf_z)

        h = gelu(groupnorm(conv3x3(x, w1_ref[...], stk1_ref), g1_ref, b1_ref))
        h = groupnorm(conv3x3(h, w2_ref[...], stk2_ref), g2_ref, b2_ref)
        if residual:
            h = gelu(x + h)
        out_ref[0, :, :] = h                                         # [Cout, S2]

    def fixed(shape):
        return pl.BlockSpec(shape, lambda b, n=len(shape): (0,) * n)

    def forward(x_nchw, w1, g1, b1, w2, g2, b2):
        """x: [B, Cin, H, W]; w1: [Cmid, Cin, 3, 3]; w2: [Cout, Cmid, 3, 3]; g/b: [C]."""
        B = x_nchw.shape[0]
        x2 = x_nchw.reshape(B, Cin, S2).astype(jnp.float32)          # free reshape
        # PyTorch OIHW -> tap-major [Cout, 9*Cin] matching the stacked activations.
        w1m = jnp.transpose(w1, (0, 2, 3, 1)).reshape(Cmid, 9 * Cin).astype(jnp.float32)
        w2m = jnp.transpose(w2, (0, 2, 3, 1)).reshape(Cout, 9 * Cmid).astype(jnp.float32)
        g1c = g1.reshape(Cmid, 1).astype(jnp.float32)
        b1c = b1.reshape(Cmid, 1).astype(jnp.float32)
        g2c = g2.reshape(Cout, 1).astype(jnp.float32)
        b2c = b2.reshape(Cout, 1).astype(jnp.float32)

        out = pl.pallas_call(
            kernel,
            out_shape=jax.ShapeDtypeStruct((B, Cout, S2), jnp.float32),
            grid=(B,),
            in_specs=[
                pl.BlockSpec((1, Cin, S2), lambda b: (b, 0, 0)),
                fixed((9, S2)),
                fixed((Cmid, 9 * Cin)), fixed((Cmid, 1)), fixed((Cmid, 1)),
                fixed((Cout, 9 * Cmid)), fixed((Cout, 1)), fixed((Cout, 1)),
            ],
            out_specs=pl.BlockSpec((1, Cout, S2), lambda b: (b, 0, 0)),
            scratch_shapes=[pltpu.VMEM((9 * Cin, S2), jnp.float32),
                            pltpu.VMEM((9 * Cmid, S2), jnp.float32)],
            compiler_params=pltpu.CompilerParams(
                dimension_semantics=("parallel",)),
        )(x2, masks, w1m, g1c, b1c, w2m, g2c, b2c)
        return out.reshape(B, Cout, H, W)                            # NCHW

    return forward


# ----------------------------------------------------------------------
# Pure-JAX reference (mirrors the PyTorch module)
# ----------------------------------------------------------------------
def double_conv_ref(x, w1, g1, b1, w2, g2, b2, residual):
    def conv(h, w):
        return jax.lax.conv_general_dilated(
            h, w, window_strides=(1, 1), padding=((1, 1), (1, 1)),
            dimension_numbers=("NCHW", "OIHW", "NCHW"),
            precision=jax.lax.Precision.HIGHEST)

    def gn(h, g, b):
        mu = jnp.mean(h, axis=(1, 2, 3), keepdims=True)
        var = jnp.mean((h - mu) ** 2, axis=(1, 2, 3), keepdims=True)
        return ((h - mu) * jax.lax.rsqrt(var + 1e-5)
                * g[None, :, None, None] + b[None, :, None, None])

    h = jax.nn.gelu(gn(conv(x, w1), g1, b1), approximate=False)
    h = gn(conv(h, w2), g2, b2)
    return jax.nn.gelu(x + h, approximate=False) if residual else h


# ----------------------------------------------------------------------
# Demo / self-check
# ----------------------------------------------------------------------
if __name__ == "__main__":
    key = jax.random.PRNGKey(0)
    ks = jax.random.split(key, 13)

    B, Cin, H, W = 2, 4, 16, 16
    x = jax.random.normal(ks[0], (B, Cin, H, W), jnp.float32)

    # ---- DoubleConv(4, 8) (non-residual; mid = out = 8) ----
    Cout = 8
    w1 = 0.2 * jax.random.normal(ks[1], (Cout, Cin, 3, 3), jnp.float32)
    g1 = 1.0 + 0.05 * jax.random.normal(ks[2], (Cout,), jnp.float32)
    b1 = 0.05 * jax.random.normal(ks[3], (Cout,), jnp.float32)
    w2 = 0.2 * jax.random.normal(ks[4], (Cout, Cout, 3, 3), jnp.float32)
    g2 = 1.0 + 0.05 * jax.random.normal(ks[5], (Cout,), jnp.float32)
    b2 = 0.05 * jax.random.normal(ks[6], (Cout,), jnp.float32)

    fwd = jax.jit(make_double_conv(Cin, Cout, H, W, residual=False))
    out = jax.block_until_ready(fwd(x, w1, g1, b1, w2, g2, b2))
    assert out.shape == (B, Cout, H, W) and out.dtype == jnp.float32
    ref = double_conv_ref(x, w1, g1, b1, w2, g2, b2, residual=False)
    np.testing.assert_allclose(np.asarray(out), np.asarray(ref), rtol=1e-3, atol=1e-3)

    # ---- DoubleConv(4, 4, residual=True) ----
    w1r = 0.2 * jax.random.normal(ks[7], (Cin, Cin, 3, 3), jnp.float32)
    g1r = 1.0 + 0.05 * jax.random.normal(ks[8], (Cin,), jnp.float32)
    b1r = 0.05 * jax.random.normal(ks[9], (Cin,), jnp.float32)
    w2r = 0.2 * jax.random.normal(ks[10], (Cin, Cin, 3, 3), jnp.float32)
    g2r = 1.0 + 0.05 * jax.random.normal(ks[11], (Cin,), jnp.float32)
    b2r = 0.05 * jax.random.normal(ks[12], (Cin,), jnp.float32)

    fwd_res = jax.jit(make_double_conv(Cin, Cin, H, W, residual=True))
    out_r = jax.block_until_ready(fwd_res(x, w1r, g1r, b1r, w2r, g2r, b2r))
    assert out_r.shape == (B, Cin, H, W)
    ref_r = double_conv_ref(x, w1r, g1r, b1r, w2r, g2r, b2r, residual=True)
    np.testing.assert_allclose(np.asarray(out_r), np.asarray(ref_r), rtol=1e-3, atol=1e-3)

    print("KERNEL_OK")
</pallas_src>

<mosaic_0001>
module attributes {stable_mosaic.version = 11 : i64} {
  func.func @kernel(%arg0: i32, %arg1: memref<1x4x256xf32, #tpu.memory_space<vmem>>, %arg2: memref<9x256xf32, #tpu.memory_space<vmem>>, %arg3: memref<8x36xf32, #tpu.memory_space<vmem>>, %arg4: memref<8x1xf32, #tpu.memory_space<vmem>>, %arg5: memref<8x1xf32, #tpu.memory_space<vmem>>, %arg6: memref<8x72xf32, #tpu.memory_space<vmem>>, %arg7: memref<8x1xf32, #tpu.memory_space<vmem>>, %arg8: memref<8x1xf32, #tpu.memory_space<vmem>>, %arg9: memref<1x8x256xf32, #tpu.memory_space<vmem>>, %arg10: memref<36x256xf32, #tpu.memory_space<vmem>>, %arg11: memref<72x256xf32, #tpu.memory_space<vmem>>) attributes {dimension_semantics = [#tpu.dimension_semantics<parallel>], iteration_bounds = array<i64: 2>, scalar_prefetch = 0 : i64, scratch_operands = 2 : i64, tpu.core_type = #tpu.core_type<tc>, window_params = [{transform_indices = @transform_0, window_bounds = array<i64: 1, 4, 256>}, {pipeline_mode = #tpu.pipeline_mode<synchronous>, transform_indices = @transform_1, window_bounds = array<i64: 9, 256>}, {pipeline_mode = #tpu.pipeline_mode<synchronous>, transform_indices = @transform_2, window_bounds = array<i64: 8, 36>}, {pipeline_mode = #tpu.pipeline_mode<synchronous>, transform_indices = @transform_3, window_bounds = array<i64: 8, 1>}, {pipeline_mode = #tpu.pipeline_mode<synchronous>, transform_indices = @transform_4, window_bounds = array<i64: 8, 1>}, {pipeline_mode = #tpu.pipeline_mode<synchronous>, transform_indices = @transform_5, window_bounds = array<i64: 8, 72>}, {pipeline_mode = #tpu.pipeline_mode<synchronous>, transform_indices = @transform_6, window_bounds = array<i64: 8, 1>}, {pipeline_mode = #tpu.pipeline_mode<synchronous>, transform_indices = @transform_7, window_bounds = array<i64: 8, 1>}, {transform_indices = @transform_8, window_bounds = array<i64: 1, 8, 256>}]} {
    %c0 = arith.constant 0 : index
    %c0_0 = arith.constant 0 : index
    %c0_1 = arith.constant 0 : index
    %0 = vector.load %arg1[%c0, %c0_0, %c0_1] : memref<1x4x256xf32, #tpu.memory_space<vmem>>, vector<1x4x256xf32>
    %1 = vector.shape_cast %0 : vector<1x4x256xf32> to vector<4x256xf32>
    %c0_2 = arith.constant 0 : index
    %c0_3 = arith.constant 0 : index
    %2 = vector.load %arg3[%c0_2, %c0_3] : memref<8x36xf32, #tpu.memory_space<vmem>>, vector<8x36xf32>
    %c17_i32 = arith.constant 17 : i32
    %3 = tpu.dynamic_rotate %1 by %c17_i32 dim 1 : vector<4x256xf32>, i32 -> vector<4x256xf32>
    %c0_4 = arith.constant 0 : index
    %c0_5 = arith.constant 0 : index
    %4 = vector.load %arg2[%c0_4, %c0_5] : memref<9x256xf32, #tpu.memory_space<vmem>>, vector<1x256xf32>
    %5 = vector.broadcast %4 : vector<1x256xf32> to vector<4x256xf32>
    %6 = arith.mulf %3, %5 : vector<4x256xf32>
    %c0_6 = arith.constant 0 : index
    %c0_7 = arith.constant 0 : index
    %7 = vector.load %arg10[%c0_6, %c0_7] : memref<36x256xf32, #tpu.memory_space<vmem>>, vector<4x256xf32>
    tpu.vector_store %arg10[%c0_6, %c0_7], %6 {strides = array<i32>} : memref<36x256xf32, #tpu.memory_space<vmem>>, vector<4x256xf32>,
    %c16_i32 = arith.constant 16 : i32
    %8 = tpu.dynamic_rotate %1 by %c16_i32 dim 1 : vector<4x256xf32>, i32 -> vector<4x256xf32>
    %c1 = arith.constant 1 : index
    %c0_8 = arith.constant 0 : index
    %9 = vector.load %arg2[%c1, %c0_8] : memref<9x256xf32, #tpu.memory_space<vmem>>, vector<1x256xf32>
    %10 = vector.broadcast %9 : vector<1x256xf32> to vector<4x256xf32>
    %11 = arith.mulf %8, %10 : vector<4x256xf32>
    %c4 = arith.constant 4 : index
    %c0_9 = arith.constant 0 : index
    %12 = vector.load %arg10[%c4, %c0_9] : memref<36x256xf32, #tpu.memory_space<vmem>>, vector<4x256xf32>
    tpu.vector_store %arg10[%c4, %c0_9], %11 {strides = array<i32>} : memref<36x256xf32, #tpu.memory_space<vmem>>, vector<4x256xf32>,
    %c15_i32 = arith.constant 15 : i32
    %13 = tpu.dynamic_rotate %1 by %c15_i32 dim 1 : vector<4x256xf32>, i32 -> vector<4x256xf32>
    %c2 = arith.constant 2 : index
    %c0_10 = arith.constant 0 : index
    %14 = vector.load %arg2[%c2, %c0_10] : memref<9x256xf32, #tpu.memory_space<vmem>>, vector<1x256xf32>
    %15 = vector.broadcast %14 : vector<1x256xf32> to vector<4x256xf32>
    %16 = arith.mulf %13, %15 : vector<4x256xf32>
    %c8 = arith.constant 8 : index
    %c0_11 = arith.constant 0 : index
    %17 = vector.load %arg10[%c8, %c0_11] : memref<36x256xf32, #tpu.memory_space<vmem>>, vector<4x256xf32>
    tpu.vector_store %arg10[%c8, %c0_11], %16 {strides = array<i32>} : memref<36x256xf32, #tpu.memory_space<vmem>>, vector<4x256xf32>,
    %c1_i32 = arith.constant 1 : i32
    %18 = tpu.dynamic_rotate %1 by %c1_i32 dim 1 : vector<4x256xf32>, i32 -> vector<4x256xf32>
    %c3 = arith.constant 3 : index
    %c0_12 = arith.constant 0 : index
    %19 = vector.load %arg2[%c3, %c0_12] : memref<9x256xf32, #tpu.memory_space<vmem>>, vector<1x256xf32>
    %20 = vector.broadcast %19 : vector<1x256xf32> to vector<4x256xf32>
    %21 = arith.mulf %18, %20 : vector<4x256xf32>
    %c12 = arith.constant 12 : index
    %c0_13 = arith.constant 0 : index
    %22 = vector.load %arg10[%c12, %c0_13] : memref<36x256xf32, #tpu.memory_space<vmem>>, vector<4x256xf32>
    tpu.vector_store %arg10[%c12, %c0_13], %21 {strides = array<i32>} : memref<36x256xf32, #tpu.memory_space<vmem>>, vector<4x256xf32>,
    %c16 = arith.constant 16 : index
    %c0_14 = arith.constant 0 : index
    %23 = vector.load %arg10[%c16, %c0_14] : memref<36x256xf32, #tpu.memory_space<vmem>>, vector<4x256xf32>
    tpu.vector_store %arg10[%c16, %c0_14], %1 {strides = array<i32>} : memref<36x256xf32, #tpu.memory_space<vmem>>, vector<4x256xf32>,
    %c255_i32 = arith.constant 255 : i32
    %24 = tpu.dynamic_rotate %1 by %c255_i32 dim 1 : vector<4x256xf32>, i32 -> vector<4x256xf32>
    %c5 = arith.constant 5 : index
    %c0_15 = arith.constant 0 : index
    %25 = vector.load %arg2[%c5, %c0_15] : memref<9x256xf32, #tpu.memory_space<vmem>>, vector<1x256xf32>
    %26 = vector.broadcast %25 : vector<1x256xf32> to vector<4x256xf32>
    %27 = arith.mulf %24, %26 : vector<4x256xf32>
    %c20 = arith.constant 20 : index
    %c0_16 = arith.constant 0 : index
    %28 = vector.load %arg10[%c20, %c0_16] : memref<36x256xf32, #tpu.memory_space<vmem>>, vector<4x256xf32>
    tpu.vector_store %arg10[%c20, %c0_16], %27 {strides = array<i32>} : memref<36x256xf32, #tpu.memory_space<vmem>>, vector<4x256xf32>,
    %c241_i32 = arith.constant 241 : i32
    %29 = tpu.dynamic_rotate %1 by %c241_i32 dim 1 : vector<4x256xf32>, i32 -> vector<4x256xf32>
    %c6 = arith.constant 6 : index
    %c0_17 = arith.constant 0 : index
    %30 = vector.load %arg2[%c6, %c0_17] : memref<9x256xf32, #tpu.memory_space<vmem>>, vector<1x256xf32>
    %31 = vector.broadcast %30 : vector<1x256xf32> to vector<4x256xf32>
    %32 = arith.mulf %29, %31 : vector<4x256xf32>
    %c24 = arith.constant 24 : index
    %c0_18 = arith.constant 0 : index
    %33 = vector.load %arg10[%c24, %c0_18] : memref<36x256xf32, #tpu.memory_space<vmem>>, vector<4x256xf32>
    tpu.vector_store %arg10[%c24, %c0_18], %32 {strides = array<i32>} : memref<36x256xf32, #tpu.memory_space<vmem>>, vector<4x256xf32>,
    %c240_i32 = arith.constant 240 : i32
    %34 = tpu.dynamic_rotate %1 by %c240_i32 dim 1 : vector<4x256xf32>, i32 -> vector<4x256xf32>
    %c7 = arith.constant 7 : index
    %c0_19 = arith.constant 0 : index
    %35 = vector.load %arg2[%c7, %c0_19] : memref<9x256xf32, #tpu.memory_space<vmem>>, vector<1x256xf32>
    %36 = vector.broadcast %35 : vector<1x256xf32> to vector<4x256xf32>
    %37 = arith.mulf %34, %36 : vector<4x256xf32>
    %c28 = arith.constant 28 : index
    %c0_20 = arith.constant 0 : index
    %38 = vector.load %arg10[%c28, %c0_20] : memref<36x256xf32, #tpu.memory_space<vmem>>, vector<4x256xf32>
    tpu.vector_store %arg10[%c28, %c0_20], %37 {strides = array<i32>} : memref<36x256xf32, #tpu.memory_space<vmem>>, vector<4x256xf32>,
    %c239_i32 = arith.constant 239 : i32
    %39 = tpu.dynamic_rotate %1 by %c239_i32 dim 1 : vector<4x256xf32>, i32 -> vector<4x256xf32>
    %c8_21 = arith.constant 8 : index
    %c0_22 = arith.constant 0 : index
    %40 = vector.load %arg2[%c8_21, %c0_22] : memref<9x256xf32, #tpu.memory_space<vmem>>, vector<1x256xf32>
    %41 = vector.broadcast %40 : vector<1x256xf32> to vector<4x256xf32>
    %42 = arith.mulf %39, %41 : vector<4x256xf32>
    %c32 = arith.constant 32 : index
    %c0_23 = arith.constant 0 : index
    %43 = vector.load %arg10[%c32, %c0_23] : memref<36x256xf32, #tpu.memory_space<vmem>>, vector<4x256xf32>
    tpu.vector_store %arg10[%c32, %c0_23], %42 {strides = array<i32>} : memref<36x256xf32, #tpu.memory_space<vmem>>, vector<4x256xf32>,
    %c0_24 = arith.constant 0 : index
    %c0_25 = arith.constant 0 : index
    %44 = vector.load %arg10[%c0_24, %c0_25] : memref<36x256xf32, #tpu.memory_space<vmem>>, vector<36x256xf32>
    %cst = arith.constant dense<0.000000e+00> : vector<8x256xf32>
    %45 = tpu.matmul %2, %44, %cst {dimension_numbers = #tpu.dot_dimension_numbers<[1], [0], [0], [1], [0, 0, 1, 1], [], []>} : vector<8x36xf32>, vector<36x256xf32>, vector<8x256xf32> -> vector<8x256xf32>
    %46 = vector.shape_cast %45 : vector<8x256xf32> to vector<1x8x256xf32>
    %cst_26 = arith.constant dense<0.000000e+00> : vector<1xf32>
    %47 = vector.multi_reduction <add>, %46, %cst_26 [1, 2] : vector<1x8x256xf32> to vector<1xf32>
    %48 = vector.shape_cast %47 : vector<1xf32> to vector<1x1x1xf32>
    %49 = vector.extract %48[0, 0, 0] : f32 from vector<1x1x1xf32>
    %50 = arith.mulf %45, %45 : vector<8x256xf32>
    %51 = vector.shape_cast %50 : vector<8x256xf32> to vector<1x8x256xf32>
    %cst_27 = arith.constant dense<0.000000e+00> : vector<1xf32>
    %52 = vector.multi_reduction <add>, %51, %cst_27 [1, 2] : vector<1x8x256xf32> to vector<1xf32>
    %53 = vector.shape_cast %52 : vector<1xf32> to vector<1x1x1xf32>
    %54 = vector.extract %53[0, 0, 0] : f32 from vector<1x1x1xf32>
    %cst_28 = arith.constant 2.048000e+03 : f32
    %55 = arith.divf %49, %cst_28 : f32
    %cst_29 = arith.constant 2.048000e+03 : f32
    %56 = arith.divf %54, %cst_29 : f32
    %57 = arith.mulf %55, %55 : f32
    %58 = arith.subf %56, %57 : f32
    %59 = vector.broadcast %55 : f32 to vector<8x256xf32>
    %60 = arith.subf %45, %59 : vector<8x256xf32>
    %cst_30 = arith.constant 9.99999974E-6 : f32
    %61 = arith.addf %58, %cst_30 : f32
    %62 = math.rsqrt %61 : f32
    %63 = vector.broadcast %62 : f32 to vector<8x256xf32>
    %64 = arith.mulf %60, %63 : vector<8x256xf32>
    %c0_31 = arith.constant 0 : index
    %c0_32 = arith.constant 0 : index
    %65 = vector.load %arg4[%c0_31, %c0_32] : memref<8x1xf32, #tpu.memory_space<vmem>>, vector<8x1xf32>
    %66 = vector.broadcast %65 : vector<8x1xf32> to vector<8x256xf32>
    %67 = arith.mulf %64, %66 : vector<8x256xf32>
    %c0_33 = arith.constant 0 : index
    %c0_34 = arith.constant 0 : index
    %68 = vector.load %arg5[%c0_33, %c0_34] : memref<8x1xf32, #tpu.memory_space<vmem>>, vector<8x1xf32>
    %69 = vector.broadcast %68 : vector<8x1xf32> to vector<8x256xf32>
    %70 = arith.addf %67, %69 : vector<8x256xf32>
    %cst_35 = arith.constant 0.707106769 : f32
    %71 = vector.broadcast %cst_35 : f32 to vector<8x256xf32>
    %72 = arith.mulf %70, %71 : vector<8x256xf32>
    %73 = math.absf %72 : vector<8x256xf32>
    %cst_36 = arith.constant 0.327591091 : f32
    %74 = vector.broadcast %cst_36 : f32 to vector<8x256xf32>
    %75 = arith.mulf %74, %73 : vector<8x256xf32>
    %cst_37 = arith.constant 1.000000e+00 : f32
    %76 = vector.broadcast %cst_37 : f32 to vector<8x256xf32>
    %77 = arith.addf %76, %75 : vector<8x256xf32>
    %cst_38 = arith.constant 1.000000e+00 : f32
    %78 = vector.broadcast %cst_38 : f32 to vector<8x256xf32>
    %79 = arith.divf %78, %77 : vector<8x256xf32>
    %cst_39 = arith.constant 1.06140542 : f32
    %80 = vector.broadcast %cst_39 : f32 to vector<8x256xf32>
    %81 = arith.mulf %80, %79 : vector<8x256xf32>
    %cst_40 = arith.constant 1.45315206 : f32
    %82 = vector.broadcast %cst_40 : f32 to vector<8x256xf32>
    %83 = arith.subf %81, %82 : vector<8x256xf32>
    %84 = arith.mulf %83, %79 : vector<8x256xf32>
    %cst_41 = arith.constant 1.42141378 : f32
    %85 = vector.broadcast %cst_41 : f32 to vector<8x256xf32>
    %86 = arith.addf %84, %85 : vector<8x256xf32>
    %87 = arith.mulf %86, %79 : vector<8x256xf32>
    %cst_42 = arith.constant 0.284496725 : f32
    %88 = vector.broadcast %cst_42 : f32 to vector<8x256xf32>
    %89 = arith.subf %87, %88 : vector<8x256xf32>
    %90 = arith.mulf %89, %79 : vector<8x256xf32>
    %cst_43 = arith.constant 0.254829586 : f32
    %91 = vector.broadcast %cst_43 : f32 to vector<8x256xf32>
    %92 = arith.addf %90, %91 : vector<8x256xf32>
    %93 = arith.mulf %92, %79 : vector<8x256xf32>
    %cst_44 = arith.constant 0.000000e+00 : f32
    %94 = vector.broadcast %cst_44 : f32 to vector<8x256xf32>
    %95 = arith.subf %94, %73 : vector<8x256xf32>
    %96 = arith.mulf %95, %73 : vector<8x256xf32>
    %97 = math.exp %96 : vector<8x256xf32>
    %98 = arith.mulf %93, %97 : vector<8x256xf32>
    %cst_45 = arith.constant 1.000000e+00 : f32
    %99 = vector.broadcast %cst_45 : f32 to vector<8x256xf32>
    %100 = arith.subf %99, %98 : vector<8x256xf32>
    %cst_46 = arith.constant 0.000000e+00 : f32
    %101 = vector.broadcast %cst_46 : f32 to vector<8x256xf32>
    %102 = arith.cmpf oge, %72, %101 : vector<8x256xf32>
    %cst_47 = arith.constant 0.000000e+00 : f32
    %103 = vector.broadcast %cst_47 : f32 to vector<8x256xf32>
    %104 = arith.subf %103, %100 : vector<8x256xf32>
    %105 = arith.select %102, %100, %104 : vector<8x256xi1>, vector<8x256xf32>
    %cst_48 = arith.constant 5.000000e-01 : f32
    %106 = vector.broadcast %cst_48 : f32 to vector<8x256xf32>
    %107 = arith.mulf %106, %70 : vector<8x256xf32>
    %cst_49 = arith.constant 1.000000e+00 : f32
    %108 = vector.broadcast %cst_49 : f32 to vector<8x256xf32>
    %109 = arith.addf %108, %105 : vector<8x256xf32>
    %110 = arith.mulf %107, %109 : vector<8x256xf32>
    %c0_50 = arith.constant 0 : index
    %c0_51 = arith.constant 0 : index
    %111 = vector.load %arg6[%c0_50, %c0_51] : memref<8x72xf32, #tpu.memory_space<vmem>>, vector<8x72xf32>
    %c17_i32_52 = arith.constant 17 : i32
    %112 = tpu.dynamic_rotate %110 by %c17_i32_52 dim 1 : vector<8x256xf32>, i32 -> vector<8x256xf32>
    %c0_53 = arith.constant 0 : index
    %c0_54 = arith.constant 0 : index
    %113 = vector.load %arg2[%c0_53, %c0_54] : memref<9x256xf32, #tpu.memory_space<vmem>>, vector<1x256xf32>
    %114 = vector.broadcast %113 : vector<1x256xf32> to vector<8x256xf32>
    %115 = arith.mulf %112, %114 : vector<8x256xf32>
    %c0_55 = arith.constant 0 : index
    %c0_56 = arith.constant 0 : index
    %116 = vector.load %arg11[%c0_55, %c0_56] : memref<72x256xf32, #tpu.memory_space<vmem>>, vector<8x256xf32>
    tpu.vector_store %arg11[%c0_55, %c0_56], %115 {strides = array<i32>} : memref<72x256xf32, #tpu.memory_space<vmem>>, vector<8x256xf32>,
    %c16_i32_57 = arith.constant 16 : i32
    %117 = tpu.dynamic_rotate %110 by %c16_i32_57 dim 1 : vector<8x256xf32>, i32 -> vector<8x256xf32>
    %c1_58 = arith.constant 1 : index
    %c0_59 = arith.constant 0 : index
    %118 = vector.load %arg2[%c1_58, %c0_59] : memref<9x256xf32, #tpu.memory_space<vmem>>, vector<1x256xf32>
    %119 = vector.broadcast %118 : vector<1x256xf32> to vector<8x256xf32>
    %120 = arith.mulf %117, %119 : vector<8x256xf32>
    %c8_60 = arith.constant 8 : index
    %c0_61 = arith.constant 0 : index
    %121 = vector.load %arg11[%c8_60, %c0_61] : memref<72x256xf32, #tpu.memory_space<vmem>>, vector<8x256xf32>
    tpu.vector_store %arg11[%c8_60, %c0_61], %120 {strides = array<i32>} : memref<72x256xf32, #tpu.memory_space<vmem>>, vector<8x256xf32>,
    %c15_i32_62 = arith.constant 15 : i32
    %122 = tpu.dynamic_rotate %110 by %c15_i32_62 dim 1 : vector<8x256xf32>, i32 -> vector<8x256xf32>
    %c2_63 = arith.constant 2 : index
    %c0_64 = arith.constant 0 : index
    %123 = vector.load %arg2[%c2_63, %c0_64] : memref<9x256xf32, #tpu.memory_space<vmem>>, vector<1x256xf32>
    %124 = vector.broadcast %123 : vector<1x256xf32> to vector<8x256xf32>
    %125 = arith.mulf %122, %124 : vector<8x256xf32>
    %c16_65 = arith.constant 16 : index
    %c0_66 = arith.constant 0 : index
    %126 = vector.load %arg11[%c16_65, %c0_66] : memref<72x256xf32, #tpu.memory_space<vmem>>, vector<8x256xf32>
    tpu.vector_store %arg11[%c16_65, %c0_66], %125 {strides = array<i32>} : memref<72x256xf32, #tpu.memory_space<vmem>>, vector<8x256xf32>,
    %c1_i32_67 = arith.constant 1 : i32
    %127 = tpu.dynamic_rotate %110 by %c1_i32_67 dim 1 : vector<8x256xf32>, i32 -> vector<8x256xf32>
    %c3_68 = arith.constant 3 : index
    %c0_69 = arith.constant 0 : index
    %128 = vector.load %arg2[%c3_68, %c0_69] : memref<9x256xf32, #tpu.memory_space<vmem>>, vector<1x256xf32>
    %129 = vector.broadcast %128 : vector<1x256xf32> to vector<8x256xf32>
    %130 = arith.mulf %127, %129 : vector<8x256xf32>
    %c24_70 = arith.constant 24 : index
    %c0_71 = arith.constant 0 : index
    %131 = vector.load %arg11[%c24_70, %c0_71] : memref<72x256xf32, #tpu.memory_space<vmem>>, vector<8x256xf32>
    tpu.vector_store %arg11[%c24_70, %c0_71], %130 {strides = array<i32>} : memref<72x256xf32, #tpu.memory_space<vmem>>, vector<8x256xf32>,
    %c32_72 = arith.constant 32 : index
    %c0_73 = arith.constant 0 : index
    %132 = vector.load %arg11[%c32_72, %c0_73] : memref<72x256xf32, #tpu.memory_space<vmem>>, vector<8x256xf32>
    tpu.vector_store %arg11[%c32_72, %c0_73], %110 {strides = array<i32>} : memref<72x256xf32, #tpu.memory_space<vmem>>, vector<8x256xf32>,
    %c255_i32_74 = arith.constant 255 : i32
    %133 = tpu.dynamic_rotate %110 by %c255_i32_74 dim 1 : vector<8x256xf32>, i32 -> vector<8x256xf32>
    %c5_75 = arith.constant 5 : index
    %c0_76 = arith.constant 0 : index
    %134 = vector.load %arg2[%c5_75, %c0_76] : memref<9x256xf32, #tpu.memory_space<vmem>>, vector<1x256xf32>
    %135 = vector.broadcast %134 : vector<1x256xf32> to vector<8x256xf32>
    %136 = arith.mulf %133, %135 : vector<8x256xf32>
    %c40 = arith.constant 40 : index
    %c0_77 = arith.constant 0 : index
    %137 = vector.load %arg11[%c40, %c0_77] : memref<72x256xf32, #tpu.memory_space<vmem>>, vector<8x256xf32>
    tpu.vector_store %arg11[%c40, %c0_77], %136 {strides = array<i32>} : memref<72x256xf32, #tpu.memory_space<vmem>>, vector<8x256xf32>,
    %c241_i32_78 = arith.constant 241 : i32
    %138 = tpu.dynamic_rotate %110 by %c241_i32_78 dim 1 : vector<8x256xf32>, i32 -> vector<8x256xf32>
    %c6_79 = arith.constant 6 : index
    %c0_80 = arith.constant 0 : index
    %139 = vector.load %arg2[%c6_79, %c0_80] : memref<9x256xf32, #tpu.memory_space<vmem>>, vector<1x256xf32>
    %140 = vector.broadcast %139 : vector<1x256xf32> to vector<8x256xf32>
    %141 = arith.mulf %138, %140 : vector<8x256xf32>
    %c48 = arith.constant 48 : index
    %c0_81 = arith.constant 0 : index
    %142 = vector.load %arg11[%c48, %c0_81] : memref<72x256xf32, #tpu.memory_space<vmem>>, vector<8x256xf32>
    tpu.vector_store %arg11[%c48, %c0_81], %141 {strides = array<i32>} : memref<72x256xf32, #tpu.memory_space<vmem>>, vector<8x256xf32>,
    %c240_i32_82 = arith.constant 240 : i32
    %143 = tpu.dynamic_rotate %110 by %c240_i32_82 dim 1 : vector<8x256xf32>, i32 -> vector<8x256xf32>
    %c7_83 = arith.constant 7 : index
    %c0_84 = arith.constant 0 : index
    %144 = vector.load %arg2[%c7_83, %c0_84] : memref<9x256xf32, #tpu.memory_space<vmem>>, vector<1x256xf32>
    %145 = vector.broadcast %144 : vector<1x256xf32> to vector<8x256xf32>
    %146 = arith.mulf %143, %145 : vector<8x256xf32>
    %c56 = arith.constant 56 : index
    %c0_85 = arith.constant 0 : index
    %147 = vector.load %arg11[%c56, %c0_85] : memref<72x256xf32, #tpu.memory_space<vmem>>, vector<8x256xf32>
    tpu.vector_store %arg11[%c56, %c0_85], %146 {strides = array<i32>} : memref<72x256xf32, #tpu.memory_space<vmem>>, vector<8x256xf32>,
    %c239_i32_86 = arith.constant 239 : i32
    %148 = tpu.dynamic_rotate %110 by %c239_i32_86 dim 1 : vector<8x256xf32>, i32 -> vector<8x256xf32>
    %c8_87 = arith.constant 8 : index
    %c0_88 = arith.constant 0 : index
    %149 = vector.load %arg2[%c8_87, %c0_88] : memref<9x256xf32, #tpu.memory_space<vmem>>, vector<1x256xf32>
    %150 = vector.broadcast %149 : vector<1x256xf32> to vector<8x256xf32>
    %151 = arith.mulf %148, %150 : vector<8x256xf32>
    %c64 = arith.constant 64 : index
    %c0_89 = arith.constant 0 : index
    %152 = vector.load %arg11[%c64, %c0_89] : memref<72x256xf32, #tpu.memory_space<vmem>>, vector<8x256xf32>
    tpu.vector_store %arg11[%c64, %c0_89], %151 {strides = array<i32>} : memref<72x256xf32, #tpu.memory_space<vmem>>, vector<8x256xf32>,
    %c0_90 = arith.constant 0 : index
    %c0_91 = arith.constant 0 : index
    %153 = vector.load %arg11[%c0_90, %c0_91] : memref<72x256xf32, #tpu.memory_space<vmem>>, vector<72x256xf32>
    %cst_92 = arith.constant dense<0.000000e+00> : vector<8x256xf32>
    %154 = tpu.matmul %111, %153, %cst_92 {dimension_numbers = #tpu.dot_dimension_numbers<[1], [0], [0], [1], [0, 0, 1, 1], [], []>} : vector<8x72xf32>, vector<72x256xf32>, vector<8x256xf32> -> vector<8x256xf32>
    %155 = vector.shape_cast %154 : vector<8x256xf32> to vector<1x8x256xf32>
    %cst_93 = arith.constant dense<0.000000e+00> : vector<1xf32>
    %156 = vector.multi_reduction <add>, %155, %cst_93 [1, 2] : vector<1x8x256xf32> to vector<1xf32>
    %157 = vector.shape_cast %156 : vector<1xf32> to vector<1x1x1xf32>
    %158 = vector.extract %157[0, 0, 0] : f32 from vector<1x1x1xf32>
    %159 = arith.mulf %154, %154 : vector<8x256xf32>
    %160 = vector.shape_cast %159 : vector<8x256xf32> to vector<1x8x256xf32>
    %cst_94 = arith.constant dense<0.000000e+00> : vector<1xf32>
    %161 = vector.multi_reduction <add>, %160, %cst_94 [1, 2] : vector<1x8x256xf32> to vector<1xf32>
    %162 = vector.shape_cast %161 : vector<1xf32> to vector<1x1x1xf32>
    %163 = vector.extract %162[0, 0, 0] : f32 from vector<1x1x1xf32>
    %cst_95 = arith.constant 2.048000e+03 : f32
    %164 = arith.divf %158, %cst_95 : f32
    %cst_96 = arith.constant 2.048000e+03 : f32
    %165 = arith.divf %163, %cst_96 : f32
    %166 = arith.mulf %164, %164 : f32
    %167 = arith.subf %165, %166 : f32
    %168 = vector.broadcast %164 : f32 to vector<8x256xf32>
    %169 = arith.subf %154, %168 : vector<8x256xf32>
    %cst_97 = arith.constant 9.99999974E-6 : f32
    %170 = arith.addf %167, %cst_97 : f32
    %171 = math.rsqrt %170 : f32
    %172 = vector.broadcast %171 : f32 to vector<8x256xf32>
    %173 = arith.mulf %169, %172 : vector<8x256xf32>
    %c0_98 = arith.constant 0 : index
    %c0_99 = arith.constant 0 : index
    %174 = vector.load %arg7[%c0_98, %c0_99] : memref<8x1xf32, #tpu.memory_space<vmem>>, vector<8x1xf32>
    %175 = vector.broadcast %174 : vector<8x1xf32> to vector<8x256xf32>
    %176 = arith.mulf %173, %175 : vector<8x256xf32>
    %c0_100 = arith.constant 0 : index
    %c0_101 = arith.constant 0 : index
    %177 = vector.load %arg8[%c0_100, %c0_101] : memref<8x1xf32, #tpu.memory_space<vmem>>, vector<8x1xf32>
    %178 = vector.broadcast %177 : vector<8x1xf32> to vector<8x256xf32>
    %179 = arith.addf %176, %178 : vector<8x256xf32>
    %c0_102 = arith.constant 0 : index
    %c0_103 = arith.constant 0 : index
    %c0_104 = arith.constant 0 : index
    %180 = vector.load %arg9[%c0_102, %c0_103, %c0_104] : memref<1x8x256xf32, #tpu.memory_space<vmem>>, vector<1x8x256xf32>
    %181 = vector.shape_cast %180 : vector<1x8x256xf32> to vector<8x256xf32>
    %182 = vector.shape_cast %179 : vector<8x256xf32> to vector<1x8x256xf32>
    tpu.vector_store %arg9[%c0_102, %c0_103, %c0_104], %182 {strides = array<i32>} : memref<1x8x256xf32, #tpu.memory_space<vmem>>, vector<1x8x256xf32>,
    return
  }
  func.func @transform_0(%arg0: i32) -> (i32, i32, i32) {
    %c0_i32 = arith.constant 0 : i32
    %c0_i32_0 = arith.constant 0 : i32
    %c0_i32_1 = arith.constant 0 : i32
    return %arg0, %c0_i32, %c0_i32_0 : i32, i32, i32
  }
  func.func @transform_1(%arg0: i32) -> (i32, i32) {
    %c0_i32 = arith.constant 0 : i32
    %c0_i32_0 = arith.constant 0 : i32
    %c0_i32_1 = arith.constant 0 : i32
    return %c0_i32, %c0_i32_0 : i32, i32
  }
  func.func @transform_2(%arg0: i32) -> (i32, i32) {
    %c0_i32 = arith.constant 0 : i32
    %c0_i32_0 = arith.constant 0 : i32
    %c0_i32_1 = arith.constant 0 : i32
    return %c0_i32, %c0_i32_0 : i32, i32
  }
  func.func @transform_3(%arg0: i32) -> (i32, i32) {
    %c0_i32 = arith.constant 0 : i32
    %c0_i32_0 = arith.constant 0 : i32
    %c0_i32_1 = arith.constant 0 : i32
    return %c0_i32, %c0_i32_0 : i32, i32
  }
  func.func @transform_4(%arg0: i32) -> (i32, i32) {
    %c0_i32 = arith.constant 0 : i32
    %c0_i32_0 = arith.constant 0 : i32
    %c0_i32_1 = arith.constant 0 : i32
    return %c0_i32, %c0_i32_0 : i32, i32
  }
  func.func @transform_5(%arg0: i32) -> (i32, i32) {
    %c0_i32 = arith.constant 0 : i32
    %c0_i32_0 = arith.constant 0 : i32
    %c0_i32_1 = arith.constant 0 : i32
    return %c0_i32, %c0_i32_0 : i32, i32
  }
  func.func @transform_6(%arg0: i32) -> (i32, i32) {
    %c0_i32 = arith.constant 0 : i32
    %c0_i32_0 = arith.constant 0 : i32
    %c0_i32_1 = arith.constant 0 : i32
    return %c0_i32, %c0_i32_0 : i32, i32
  }
  func.func @transform_7(%arg0: i32) -> (i32, i32) {
    %c0_i32 = arith.constant 0 : i32
    %c0_i32_0 = arith.constant 0 : i32
    %c0_i32_1 = arith.constant 0 : i32
    return %c0_i32, %c0_i32_0 : i32, i32
  }
  func.func @transform_8(%arg0: i32) -> (i32, i32, i32) {
    %c0_i32 = arith.constant 0 : i32
    %c0_i32_0 = arith.constant 0 : i32
    %c0_i32_1 = arith.constant 0 : i32
    return %arg0, %c0_i32, %c0_i32_0 : i32, i32, i32
  }
}

</mosaic_0001>

<llo_original>
// kernel: forward.1
$region0: #{forward.1}
  #allocation0 [shape = 'u32[]', space=smem, size = 0x4, offset = 0x4, fixed_abs, tag = 'smem constant byte address 0x4 - core index']
  #allocation1 [shape = 'u32[144,128]{1,0:T(1,128)}', space=vmem, size = 0x12000, scoped, tag = 'internal scratch']
  #allocation2 [shape = 'f32[36,256]{1,0:T(8,128)}', space=vmem, size = 0xa000, scoped, tag = 'scratch operand']
  #allocation3 [shape = 'f32[72,256]{1,0:T(8,128)}', space=vmem, size = 0x12000, scoped, tag = 'scratch operand']
  %s0 = inlined_call_operand.vmem [shape: f32[2,4,256], index: 0, kind: input, shape index: {}]
  %s1 = inlined_call_operand.vmem [shape: f32[9,256], index: 1, kind: input, shape index: {}]
  %s2 = inlined_call_operand.vmem [shape: f32[8,36], index: 2, kind: input, shape index: {}]
  %s3 = inlined_call_operand.vmem [shape: f32[8,1], index: 3, kind: input, shape index: {}]
  %s4 = inlined_call_operand.vmem [shape: f32[8,1], index: 4, kind: input, shape index: {}]
  %s5 = inlined_call_operand.vmem [shape: f32[8,72], index: 5, kind: input, shape index: {}]
  %s6 = inlined_call_operand.vmem [shape: f32[8,1], index: 6, kind: input, shape index: {}]
  %s7 = inlined_call_operand.vmem [shape: f32[8,1], index: 7, kind: input, shape index: {}]
  %s8 = inlined_call_operand.vmem [shape: f32[2,8,256], index: 8, kind: output, shape index: {}]
  %s9 = sld [smem:[#allocation0]]
  $region65: #{forward.1} parent=0
    _
  %s11 = ssub.s32 1, %s9
  %s12 = scalar_select 0, %s11, %s9
  loop: start=0, step=1, limit=4
  $region2: #{forward.1} parent=0 // loop_pre_header
    _
  $region3: #{forward.1} parent=0 // loop_header
    %s14 = sphi 0, %s18
    %p15 = scmp.ge.s32.totalorder %s14, 4
    %s24 = sphi 0, %s26
    %s27 = sphi 0, %s24
    %s28 = sphi 0, %s27
    %s44 = sphi 0, %s28
    %s48 = sphi 0, %s48
    %s50 = sphi 0, %s48
    %s51 = sphi 0, %s50
    %s65 = sphi 0, %s51
    %s69 = sphi 0, %s69
    %s71 = sphi 0, %s69
    %s72 = sphi 0, %s71
    %s86 = sphi 0, %s72
    %s90 = sphi 0, %s90
    %s92 = sphi 0, %s90
    %s93 = sphi 0, %s92
    %s107 = sphi 0, %s93
    %s111 = sphi 0, %s111
    %s113 = sphi 0, %s111
    %s114 = sphi 0, %s113
    %s128 = sphi 0, %s114
    %s132 = sphi 0, %s132
    %s134 = sphi 0, %s132
    %s135 = sphi 0, %s134
    %s149 = sphi 0, %s135
    %s153 = sphi 0, %s153
    %s155 = sphi 0, %s153
    %s156 = sphi 0, %s155
    %s170 = sphi 0, %s156
    %s174 = sphi 0, %s174
    %s176 = sphi 0, %s174
    %s177 = sphi 0, %s176
    %s191 = sphi 0, %s177
    %s197 = sphi 0, %s199
    %s200 = sphi 0, %s197
    %s201 = sphi 0, %s200
    %s217 = sphi 0, %s201
  $region4: #{forward.1} parent=0 // loop_header_branch
    %17 = sbr.rel (%p15) target = $region8
  $region5: #{forward.1} parent=0 // loop_body
    %s19 = ssub.s32 %s14, 1
    %s20 = ssub.s32 %s14, 2
    %s21 = sadd.s32 %s14, 1
    %s22 = ssub.s32 %s14, %s21
    %p23 = scmp.eq.s32.totalorder %s22, 0
    %s25 = sadd.s32 %s24, 1
    %s26 = scalar_select %p23, %s24, %s25
    %p29 = pneg %p23
    %p30 = scmp.eq.s32.totalorder %s14, 1
    %p31 = por %p29, %p30
    %p32 = scmp.ne.s32.totalorder %s24, %s27
    %p33 = scmp.eq.s32.totalorder %s14, 0
    %p34 = por %p32, %p33
    %p35 = scmp.ne.s32.totalorder %s24, %s27
    %p36 = scmp.eq.s32.totalorder %s19, 1
    %p37 = por %p35, %p36
    %p38 = scmp.ne.s32.totalorder %s27, %s28
    %p39 = scmp.eq.s32.totalorder %s19, 0
    %p40 = por %p38, %p39
    %p41 = scmp.ne.s32.totalorder %s27, %s28
    %p42 = scmp.eq.s32.totalorder %s20, 1
    %p43 = por %p41, %p42
    %p45 = scmp.ne.s32.totalorder %s28, %s44
    %p46 = scmp.eq.s32.totalorder %s20, 0
    %p47 = por %p45, %p46
    %s49 = sadd.s32 %s48, 1
    %p52 = scmp.eq.s32.totalorder %s14, 1
    %p53 = scmp.ne.s32.totalorder %s48, %s50
    %p54 = scmp.eq.s32.totalorder %s14, 0
    %p55 = por %p53, %p54
    %p56 = scmp.ne.s32.totalorder %s48, %s50
    %p57 = scmp.eq.s32.totalorder %s19, 1
    %p58 = por %p56, %p57
    %p59 = scmp.ne.s32.totalorder %s50, %s51
    %p60 = scmp.eq.s32.totalorder %s19, 0
    %p61 = por %p59, %p60
    %p62 = scmp.ne.s32.totalorder %s50, %s51
    %p63 = scmp.eq.s32.totalorder %s20, 1
    %p64 = por %p62, %p63
    %p66 = scmp.ne.s32.totalorder %s51, %s65
    %p67 = scmp.eq.s32.totalorder %s20, 0
    %p68 = por %p66, %p67
    %s70 = sadd.s32 %s69, 1
    %p73 = scmp.eq.s32.totalorder %s14, 1
    %p74 = scmp.ne.s32.totalorder %s69, %s71
    %p75 = scmp.eq.s32.totalorder %s14, 0
    %p76 = por %p74, %p75
    %p77 = scmp.ne.s32.totalorder %s69, %s71
    %p78 = scmp.eq.s32.totalorder %s19, 1
    %p79 = por %p77, %p78
    %p80 = scmp.ne.s32.totalorder %s71, %s72
    %p81 = scmp.eq.s32.totalorder %s19, 0
    %p82 = por %p80, %p81
    %p83 = scmp.ne.s32.totalorder %s71, %s72
    %p84 = scmp.eq.s32.totalorder %s20, 1
    %p85 = por %p83, %p84
    %p87 = scmp.ne.s32.totalorder %s72, %s86
    %p88 = scmp.eq.s32.totalorder %s20, 0
    %p89 = por %p87, %p88
    %s91 = sadd.s32 %s90, 1
    %p94 = scmp.eq.s32.totalorder %s14, 1
    %p95 = scmp.ne.s32.totalorder %s90, %s92
    %p96 = scmp.eq.s32.totalorder %s14, 0
    %p97 = por %p95, %p96
    %p98 = scmp.ne.s32.totalorder %s90, %s92
    %p99 = scmp.eq.s32.totalorder %s19, 1
    %p100 = por %p98, %p99
    %p101 = scmp.ne.s32.totalorder %s92, %s93
    %p102 = scmp.eq.s32.totalorder %s19, 0
    %p103 = por %p101, %p102
    %p104 = scmp.ne.s32.totalorder %s92, %s93
    %p105 = scmp.eq.s32.totalorder %s20, 1
    %p106 = por %p104, %p105
    %p108 = scmp.ne.s32.totalorder %s93, %s107
    %p109 = scmp.eq.s32.totalorder %s20, 0
    %p110 = por %p108, %p109
    %s112 = sadd.s32 %s111, 1
    %p115 = scmp.eq.s32.totalorder %s14, 1
    %p116 = scmp.ne.s32.totalorder %s111, %s113
    %p117 = scmp.eq.s32.totalorder %s14, 0
    %p118 = por %p116, %p117
    %p119 = scmp.ne.s32.totalorder %s111, %s113
    %p120 = scmp.eq.s32.totalorder %s19, 1
    %p121 = por %p119, %p120
    %p122 = scmp.ne.s32.totalorder %s113, %s114
    %p123 = scmp.eq.s32.totalorder %s19, 0
    %p124 = por %p122, %p123
    %p125 = scmp.ne.s32.totalorder %s113, %s114
    %p126 = scmp.eq.s32.totalorder %s20, 1
    %p127 = por %p125, %p126
    %p129 = scmp.ne.s32.totalorder %s114, %s128
    %p130 = scmp.eq.s32.totalorder %s20, 0
    %p131 = por %p129, %p130
    %s133 = sadd.s32 %s132, 1
    %p136 = scmp.eq.s32.totalorder %s14, 1
    %p137 = scmp.ne.s32.totalorder %s132, %s134
    %p138 = scmp.eq.s32.totalorder %s14, 0
    %p139 = por %p137, %p138
    %p140 = scmp.ne.s32.totalorder %s132, %s134
    %p141 = scmp.eq.s32.totalorder %s19, 1
    %p142 = por %p140, %p141
    %p143 = scmp.ne.s32.totalorder %s134, %s135
    %p144 = scmp.eq.s32.totalorder %s19, 0
    %p145 = por %p143, %p144
    %p146 = scmp.ne.s32.totalorder %s134, %s135
    %p147 = scmp.eq.s32.totalorder %s20, 1
    %p148 = por %p146, %p147
    %p150 = scmp.ne.s32.totalorder %s135, %s149
    %p151 = scmp.eq.s32.totalorder %s20, 0
    %p152 = por %p150, %p151
    %s154 = sadd.s32 %s153, 1
    %p157 = scmp.eq.s32.totalorder %s14, 1
    %p158 = scmp.ne.s32.totalorder %s153, %s155
    %p159 = scmp.eq.s32.totalorder %s14, 0
    %p160 = por %p158, %p159
    %p161 = scmp.ne.s32.totalorder %s153, %s155
    %p162 = scmp.eq.s32.totalorder %s19, 1
    %p163 = por %p161, %p162
    %p164 = scmp.ne.s32.totalorder %s155, %s156
    %p165 = scmp.eq.s32.totalorder %s19, 0
    %p166 = por %p164, %p165
    %p167 = scmp.ne.s32.totalorder %s155, %s156
    %p168 = scmp.eq.s32.totalorder %s20, 1
    %p169 = por %p167, %p168
    %p171 = scmp.ne.s32.totalorder %s156, %s170
    %p172 = scmp.eq.s32.totalorder %s20, 0
    %p173 = por %p171, %p172
    %s175 = sadd.s32 %s174, 1
    %p178 = scmp.eq.s32.totalorder %s14, 1
    %p179 = scmp.ne.s32.totalorder %s174, %s176
    %p180 = scmp.eq.s32.totalorder %s14, 0
    %p181 = por %p179, %p180
    %p182 = scmp.ne.s32.totalorder %s174, %s176
    %p183 = scmp.eq.s32.totalorder %s19, 1
    %p184 = por %p182, %p183
    %p185 = scmp.ne.s32.totalorder %s176, %s177
    %p186 = scmp.eq.s32.totalorder %s19, 0
    %p187 = por %p185, %p186
    %p188 = scmp.ne.s32.totalorder %s176, %s177
    %p189 = scmp.eq.s32.totalorder %s20, 1
    %p190 = por %p188, %p189
    %p192 = scmp.ne.s32.totalorder %s177, %s191
    %p193 = scmp.eq.s32.totalorder %s20, 0
    %p194 = por %p192, %p193
    %s195 = ssub.s32 %s14, %s21
    %p196 = scmp.eq.s32.totalorder %s195, 0
    %s198 = sadd.s32 %s197, 1
    %s199 = scalar_select %p196, %s197, %s198
    %p202 = pneg %p196
    %p203 = scmp.eq.s32.totalorder %s14, 1
    %p204 = por %p202, %p203
    %p205 = scmp.ne.s32.totalorder %s197, %s200
    %p206 = scmp.eq.s32.totalorder %s14, 0
    %p207 = por %p205, %p206
    %p208 = scmp.ne.s32.totalorder %s197, %s200
    %p209 = scmp.eq.s32.totalorder %s19, 1
    %p210 = por %p208, %p209
    %p211 = scmp.ne.s32.totalorder %s200, %s201
    %p212 = scmp.eq.s32.totalorder %s19, 0
    %p213 = por %p211, %p212
    %p214 = scmp.ne.s32.totalorder %s200, %s201
    %p215 = scmp.eq.s32.totalorder %s20, 1
    %p216 = por %p214, %p215
    %p218 = scmp.ne.s32.totalorder %s201, %s217
    %p219 = scmp.eq.s32.totalorder %s20, 0
    %p220 = por %p218, %p219
    %p221 = scmp.le.s32.totalorder 1, %s14
    %p222 = scmp.lt.s32.totalorder %s14, 3
    %p223 = pnand %p221, %p222
    %p224 = pneg %p223
    // Predicated region
    $region9: #{forward.1} parent=5 // pred_check
      _
    $region10: #{forward.1} parent=5 // pred_check_branch
      %226 = sbr.rel (%p223) target = $region12
    $region11: #{forward.1} parent=5 // pred_region
      %s227 = ssub.s32 %s14, 1
      // Predicated region
      $region13: #{forward.1} parent=11 // pred_check
        %p228 = pneg %p61
      $region14: #{forward.1} parent=11 // pred_check_branch
        %230 = sbr.rel (%p228) target = $region16
      $region15: #{forward.1} parent=11 // pred_region
        _
      $region16: #{forward.1} parent=11 // pred_fallthru
        _
      // Predicated region
      $region17: #{forward.1} parent=11 // pred_check
        %p231 = pneg %p82
      $region18: #{forward.1} parent=11 // pred_check_branch
        %233 = sbr.rel (%p231) target = $region20
      $region19: #{forward.1} parent=11 // pred_region
        _
      $region20: #{forward.1} parent=11 // pred_fallthru
        _
      // Predicated region
      $region21: #{forward.1} parent=11 // pred_check
        %p234 = pneg %p103
      $region22: #{forward.1} parent=11 // pred_check_branch
        %236 = sbr.rel (%p234) target = $region24
      $region23: #{forward.1} parent=11 // pred_region
        _
      $region24: #{forward.1} parent=11 // pred_fallthru
        _
      // Predicated region
      $region25: #{forward.1} parent=11 // pred_check
        %p237 = pneg %p124
      $region26: #{forward.1} parent=11 // pred_check_branch
        %239 = sbr.rel (%p237) target = $region28
      $region27: #{forward.1} parent=11 // pred_region
        _
      $region28: #{forward.1} parent=11 // pred_fallthru
        _
      // Predicated region
      $region29: #{forward.1} parent=11 // pred_check
        %p240 = pneg %p145
      $region30: #{forward.1} parent=11 // pred_check_branch
        %242 = sbr.rel (%p240) target = $region32
      $region31: #{forward.1} parent=11 // pred_region
        _
      $region32: #{forward.1} parent=11 // pred_fallthru
        _
      // Predicated region
      $region33: #{forward.1} parent=11 // pred_check
        %p243 = pneg %p166
      $region34: #{forward.1} parent=11 // pred_check_branch
        %245 = sbr.rel (%p243) target = $region36
      $region35: #{forward.1} parent=11 // pred_region
        _
      $region36: #{forward.1} parent=11 // pred_fallthru
        _
      // Predicated region
      $region37: #{forward.1} parent=11 // pred_check
        %p246 = pneg %p187
      $region38: #{forward.1} parent=11 // pred_check_branch
        %248 = sbr.rel (%p246) target = $region40
      $region39: #{forward.1} parent=11 // pred_region
        _
      $region40: #{forward.1} parent=11 // pred_fallthru
        _
    $region12: #{forward.1} parent=5 // pred_fallthru
      _
    %p249 = scmp.lt.s32.totalorder %s14, 2
    // Predicated region
    $region41: #{forward.1} parent=5 // pred_check
      %p250 = pneg %p249
    $region42: #{forward.1} parent=5 // pred_check_branch
      %252 = sbr.rel (%p250) target = $region44
    $region43: #{forward.1} parent=5 // pred_region
      // Predicated region
      $region45: #{forward.1} parent=43 // pred_check
        %p253 = pneg %p34
      $region46: #{forward.1} parent=43 // pred_check_branch
        %255 = sbr.rel (%p253) target = $region48
      $region47: #{forward.1} parent=43 // pred_region
        %p256 = scmp.lt.s32.totalorder %s14, 1
        %s257 = scalar_select %p256, %s14, 1
        %s258 = smul.addr %s257, 2
        %s259 = smul.addr %s258, 4
        %s260 = scalar_lea.vmem %s0, %s259
      $region48: #{forward.1} parent=43 // pred_fallthru
        _
    $region44: #{forward.1} parent=5 // pred_fallthru
      _
    %p261 = scmp.le.s32.totalorder 1, %s14
    %p262 = scmp.lt.s32.totalorder %s14, 3
    %p263 = pnand %p261, %p262
    %p264 = pneg %p263
    // Predicated region
    $region49: #{forward.1} parent=5 // pred_check
      _
    $region50: #{forward.1} parent=5 // pred_check_branch
      %266 = sbr.rel (%p263) target = $region52
    $region51: #{forward.1} parent=5 // pred_region
      %s267 = ssub.s32 %s14, 1
      %p268 = scmp.lt.s32.totalorder %s19, 1
      %s269 = scalar_select %p268, %s19, 1
      %s270 = smul.addr %s269, 2
      %s271 = smul.addr %s270, 4
      %s272 = scalar_lea.vmem %s0, %s271
      %p273 = pneg %p40
      %p274 = pneg %p37
      %p275 = pneg %p61
      %p276 = pneg %p58
      %p277 = pneg %p82
      %p278 = pneg %p79
      %p279 = pneg %p103
      %p280 = pneg %p100
      %p281 = pneg %p124
      %p282 = pneg %p121
      %p283 = pneg %p145
      %p284 = pneg %p142
      %p285 = pneg %p166
      %p286 = pneg %p163
      %p287 = pneg %p187
      %p288 = pneg %p184
      %p289 = pneg %p213
      %p290 = pneg %p210
      %p291 = scmp.lt.s32.totalorder %s19, 1
      %s292 = scalar_select %p291, %s19, 1
      %s293 = smul.addr %s292, 2
      %s294 = smul.addr %s293, 8
      %s295 = scalar_lea.vmem %s8, %s294
      %p296 = scmp.lt.s32.totalorder %s19, 1
      %s297 = scalar_select %p296, %s19, 1
      %s298 = smul.addr %s297, 2
      %s299 = smul.addr %s298, 4
      %s300 = scalar_lea.vmem %s0, %s299
      %p301 = scmp.lt.s32.totalorder %s19, 1
      %s302 = scalar_select %p301, %s19, 1
      %s303 = smul.addr %s302, 2
      %s304 = smul.addr %s303, 8
      %s305 = scalar_lea.vmem %s8, %s304
      %v306 = vld [vmem:[%s300] sm:$0xff]
      %v307 = vld [vmem:[%s2] sm:$0xff]
      %v309 = vcombine.high %v306, %v306
      %311 = vrot.lane.b32.xlu0 %v306, 17
      %v312 = vpop.permute.xlu0 %311
      %313 = vrot.lane.b32.xlu0 %v309, 17
      %v314 = vpop.permute.xlu0 %313
      %v315 = vlaneseq
      %v316 = vand.u32 %v315, 127
      %vm317 = vcmp.lt.s32.totalorder %v316, 17
      %v318 = vsel %vm317, %v312, %v314
      %v319 = vsel %vm317, %v314, %v312
      %v320 = vld [vmem:[%s1] ss:$8 sm:$0x3]
      %v322 = vlaneseq
      %v323 = vshrl.u32 %v322, 7
      %v324 = vsub.s32 0, %v323
      %v325 = vrot.slane %v320, %v324
      %v326 = vlaneseq
      %v327 = vshrl.u32 %v326, 7
      %v328 = vsub.s32 1, %v327
      %v329 = vrot.slane %v320, %v328
      %v332 = vmul.f32 %v319, %v325
      %v333 = vmul.f32 %v318, %v329
      %334 = vst [vmem:[#allocation2] sm:$0xf] %v332
      %335 = vst [vmem:[#allocation2 + $0x8] sm:$0xf] %v333
      %336 = vrot.lane.b32.xlu0 %v306, 16
      %v337 = vpop.permute.xlu0 %336
      %338 = vrot.lane.b32.xlu0 %v309, 16
      %v339 = vpop.permute.xlu0 %338
      %vm340 = vcmp.lt.s32.totalorder %v316, 16
      %v341 = vsel %vm340, %v337, %v339
      %v342 = vsel %vm340, %v339, %v337
      %s343 = scalar_lea.vmem %s1, 1
      %v344 = vld [vmem:[%s343] ss:$8 sm:$0x3]
      %v346 = vlaneseq
      %v347 = vshrl.u32 %v346, 7
      %v348 = vsub.s32 0, %v347
      %v349 = vrot.slane %v344, %v348
      %v350 = vlaneseq
      %v351 = vshrl.u32 %v350, 7
      %v352 = vsub.s32 1, %v351
      %v353 = vrot.slane %v344, %v352
      %v356 = vmul.f32 %v342, %v349
      %v357 = vmul.f32 %v341, %v353
      %v360 = vrot.slane %v356, 4
      %v361 = vrot.slane %v357, 4
      %364 = vst [vmem:[#allocation2] sm:$0xf0] %v360
      %365 = vst [vmem:[#allocation2 + $0x8] sm:$0xf0] %v361
      %366 = vrot.lane.b32.xlu0 %v306, 15
      %v367 = vpop.permute.xlu0 %366
      %368 = vrot.lane.b32.xlu0 %v309, 15
      %v369 = vpop.permute.xlu0 %368
      %vm370 = vcmp.lt.s32.totalorder %v316, 15
      %v371 = vsel %vm370, %v367, %v369
      %v372 = vsel %vm370, %v369, %v367
      %s373 = scalar_lea.vmem %s1, 2
      %v374 = vld [vmem:[%s373] ss:$8 sm:$0x3]
      %v376 = vlaneseq
      %v377 = vshrl.u32 %v376, 7
      %v378 = vsub.s32 0, %v377
      %v379 = vrot.slane %v374, %v378
      %v380 = vlaneseq
      %v381 = vshrl.u32 %v380, 7
      %v382 = vsub.s32 1, %v381
      %v383 = vrot.slane %v374, %v382
      %v386 = vmul.f32 %v372, %v379
      %v387 = vmul.f32 %v371, %v383
      %388 = vst [vmem:[#allocation2 + $0x10] sm:$0xf] %v386
      %389 = vst [vmem:[#allocation2 + $0x18] sm:$0xf] %v387
      %390 = vrot.lane.b32.xlu0 %v306, 1
      %v391 = vpop.permute.xlu0 %390
      %392 = vrot.lane.b32.xlu0 %v309, 1
      %v393 = vpop.permute.xlu0 %392
      %vm394 = vcmp.lt.s32.totalorder %v316, 1
      %v395 = vsel %vm394, %v391, %v393
      %v396 = vsel %vm394, %v393, %v391
      %s397 = scalar_lea.vmem %s1, 3
      %v398 = vld [vmem:[%s397] ss:$8 sm:$0x3]
      %v400 = vlaneseq
      %v401 = vshrl.u32 %v400, 7
      %v402 = vsub.s32 0, %v401
      %v403 = vrot.slane %v398, %v402
      %v404 = vlaneseq
      %v405 = vshrl.u32 %v404, 7
      %v406 = vsub.s32 1, %v405
      %v407 = vrot.slane %v398, %v406
      %v410 = vmul.f32 %v396, %v403
      %v411 = vmul.f32 %v395, %v407
      %v414 = vrot.slane %v410, 4
      %v415 = vrot.slane %v411, 4
      %418 = vst [vmem:[#allocation2 + $0x10] sm:$0xf0] %v414
      %419 = vst [vmem:[#allocation2 + $0x18] sm:$0xf0] %v415
      %420 = vst [vmem:[#allocation2 + $0x20] sm:$0xf] %v306
      %421 = vst [vmem:[#allocation2 + $0x28] sm:$0xf] %v309
      %422 = vrot.lane.b32.xlu0 %v306, 127
      %v423 = vpop.permute.xlu0 %422
      %424 = vrot.lane.b32.xlu0 %v309, 127
      %v425 = vpop.permute.xlu0 %424
      %vm426 = vcmp.lt.s32.totalorder %v316, 127
      %v427 = vsel %vm426, %v423, %v425
      %v428 = vsel %vm426, %v425, %v423
      %s429 = scalar_lea.vmem %s1, 5
      %v430 = vld [vmem:[%s429] ss:$8 sm:$0x3]
      %v432 = vlaneseq
      %v433 = vshrl.u32 %v432, 7
      %v434 = vsub.s32 0, %v433
      %v435 = vrot.slane %v430, %v434
      %v436 = vlaneseq
      %v437 = vshrl.u32 %v436, 7
      %v438 = vsub.s32 1, %v437
      %v439 = vrot.slane %v430, %v438
      %v442 = vmul.f32 %v427, %v435
      %v443 = vmul.f32 %v428, %v439
      %v446 = vrot.slane %v442, 4
      %v447 = vrot.slane %v443, 4
      %450 = vst [vmem:[#allocation2 + $0x20] sm:$0xf0] %v446
      %451 = vst [vmem:[#allocation2 + $0x28] sm:$0xf0] %v447
      %452 = vrot.lane.b32.xlu0 %v306, 113
      %v453 = vpop.permute.xlu0 %452
      %454 = vrot.lane.b32.xlu0 %v309, 113
      %v455 = vpop.permute.xlu0 %454
      %vm456 = vcmp.lt.s32.totalorder %v316, 113
      %v457 = vsel %vm456, %v453, %v455
      %v458 = vsel %vm456, %v455, %v453
      %s459 = scalar_lea.vmem %s1, 6
      %v460 = vld [vmem:[%s459] ss:$8 sm:$0x3]
      %v462 = vlaneseq
      %v463 = vshrl.u32 %v462, 7
      %v464 = vsub.s32 0, %v463
      %v465 = vrot.slane %v460, %v464
      %v466 = vlaneseq
      %v467 = vshrl.u32 %v466, 7
      %v468 = vsub.s32 1, %v467
      %v469 = vrot.slane %v460, %v468
      %v472 = vmul.f32 %v457, %v465
      %v473 = vmul.f32 %v458, %v469
      %474 = vst [vmem:[#allocation2 + $0x30] sm:$0xf] %v472
      %475 = vst [vmem:[#allocation2 + $0x38] sm:$0xf] %v473
      %476 = vrot.lane.b32.xlu0 %v306, 112
      %v477 = vpop.permute.xlu0 %476
      %478 = vrot.lane.b32.xlu0 %v309, 112
      %v479 = vpop.permute.xlu0 %478
      %vm480 = vcmp.lt.s32.totalorder %v316, 112
      %v481 = vsel %vm480, %v477, %v479
      %v482 = vsel %vm480, %v479, %v477
      %s483 = scalar_lea.vmem %s1, 7
      %v484 = vld [vmem:[%s483] ss:$8 sm:$0x3]
      %v486 = vlaneseq
      %v487 = vshrl.u32 %v486, 7
      %v488 = vsub.s32 0, %v487
      %v489 = vrot.slane %v484, %v488
      %v490 = vlaneseq
      %v491 = vshrl.u32 %v490, 7
      %v492 = vsub.s32 1, %v491
      %v493 = vrot.slane %v484, %v492
      %v496 = vmul.f32 %v481, %v489
      %v497 = vmul.f32 %v482, %v493
      %v500 = vrot.slane %v496, 4
      %v501 = vrot.slane %v497, 4
      %504 = vst [vmem:[#allocation2 + $0x30] sm:$0xf0] %v500
      %505 = vst [vmem:[#allocation2 + $0x38] sm:$0xf0] %v501
      %506 = vrot.lane.b32.xlu0 %v306, 111
      %v507 = vpop.permute.xlu0 %506
      %508 = vrot.lane.b32.xlu0 %v309, 111
      %v509 = vpop.permute.xlu0 %508
      %vm510 = vcmp.lt.s32.totalorder %v316, 111
      %v511 = vsel %vm510, %v507, %v509
      %v512 = vsel %vm510, %v509, %v507
      %s513 = scalar_lea.vmem %s1, 16
      %v514 = vld [vmem:[%s513] ss:$8 sm:$0x3]
      %v516 = vlaneseq
      %v517 = vshrl.u32 %v516, 7
      %v518 = vsub.s32 0, %v517
      %v519 = vrot.slane %v514, %v518
      %v520 = vlaneseq
      %v521 = vshrl.u32 %v520, 7
      %v522 = vsub.s32 1, %v521
      %v523 = vrot.slane %v514, %v522
      %v526 = vmul.f32 %v511, %v519
      %v527 = vmul.f32 %v512, %v523
      %528 = vst [vmem:[#allocation2 + $0x40] sm:$0xf] %v526
      %529 = vst [vmem:[#allocation2 + $0x48] sm:$0xf] %v527
      %v530 = vld [vmem:[#allocation2] sm:$0xff]
      %v531 = vld [vmem:[#allocation2 + $0x8] sm:$0xff]
      %v532 = vld [vmem:[#allocation2 + $0x10] sm:$0xff]
      %v533 = vld [vmem:[#allocation2 + $0x18] sm:$0xff]
      %v534 = vld [vmem:[#allocation2 + $0x20] sm:$0xff]
      %v535 = vld [vmem:[#allocation2 + $0x28] sm:$0xff]
      %v536 = vld [vmem:[#allocation2 + $0x30] sm:$0xff]
      %v537 = vld [vmem:[#allocation2 + $0x38] sm:$0xff]
      %v538 = vld [vmem:[#allocation2 + $0x40] sm:$0xf]
      %v539 = vld [vmem:[#allocation2 + $0x48] sm:$0xf]
      %vm540 = vcmask 293888
      %v542 = vsel %vm540, %v307, 0
      %vm544 = vcmask 1043456
      %v546 = vsel %vm544, %v538, 0
      %v549 = vsel %vm544, %v539, 0
      %551 = vmatprep.subr.mxu0 0.0
      %552 = vmatpush1.msra.mxu0 0.0
      %553 = vmatprep.subr.mxu0 0.0
      %554 = vmatpush1.msra.mxu0 0.0
      %555 = vmatprep.subr.mxu0 0.0
      %556 = vmatpush1.msra.mxu0 0.0
      %557 = vmatprep.subr.mxu0 0.0
      %558 = vmatpush1.msra.mxu0 0.0
      %559 = vmatprep.subr.mxu0 0.0
      %560 = vmatpush1.msra.mxu0 0.0
      %561 = vmatprep.subr.mxu0 0.0
      %562 = vmatpush1.msra.mxu0 0.0
      %563 = vmatprep.subr.mxu0 0.0
      %564 = vmatpush1.msra.mxu0 0.0
      %565 = vmatprep.subr.mxu0 0.0
      %566 = vmatpush1.msra.mxu0 0.0
      %567 = vmatprep.subr.mxu0 0.0
      %568 = vmatpush1.msra.mxu0 0.0
      %569 = vmatprep.subr.mxu0 0.0
      %570 = vmatpush1.msra.mxu0 0.0
      %571 = vmatprep.subr.mxu0 0.0
      %572 = vmatpush1.msra.mxu0 0.0
      %573 = vmatprep.subr.mxu0 %v549
      %574 = vmatpush1.msra.mxu0 %v546
      %575 = vmatprep.subr.mxu0 %v537
      %576 = vmatpush1.msra.mxu0 %v536
      %577 = vmatprep.subr.mxu0 %v535
      %578 = vmatpush1.msra.mxu0 %v534
      %579 = vmatprep.subr.mxu0 %v533
      %580 = vmatpush1.msra.mxu0 %v532
      %581 = vmatprep.subr.mxu0 %v531
      %582 = vmatpush1.msra.mxu0 %v530
      %583 = vmatprep.subr.mxu0 0.0
      %584 = vmatpush2.msra.mxu0 0.0
      %585 = vmatprep.subr.mxu0 0.0
      %586 = vmatpush2.msra.mxu0 0.0
      %587 = vmatprep.subr.mxu0 0.0
      %588 = vmatpush2.msra.mxu0 0.0
      %589 = vmatprep.subr.mxu0 0.0
      %590 = vmatpush2.msra.mxu0 0.0
      %591 = vmatprep.subr.mxu0 0.0
      %592 = vmatpush2.msra.mxu0 0.0
      %593 = vmatprep.subr.mxu0 0.0
      %594 = vmatpush2.msra.mxu0 0.0
      %595 = vmatprep.subr.mxu0 0.0
      %596 = vmatpush2.msra.mxu0 0.0
      %597 = vmatprep.subr.mxu0 0.0
      %598 = vmatpush2.msra.mxu0 0.0
      %599 = vmatprep.subr.mxu0 0.0
      %600 = vmatpush2.msra.mxu0 0.0
      %601 = vmatprep.subr.mxu0 0.0
      %602 = vmatpush2.msra.mxu0 0.0
      %603 = vmatprep.subr.mxu0 0.0
      %604 = vmatpush2.msra.mxu0 0.0
      %605 = vmatprep.subr.mxu0 0.0
      %606 = vmatpush2.msra.mxu0 0.0
      %607 = vmatprep.subr.mxu0 0.0
      %608 = vmatpush2.msra.mxu0 0.0
      %609 = vmatprep.subr.mxu0 0.0
      %610 = vmatpush2.msra.mxu0 0.0
      %611 = vmatprep.subr.mxu0 0.0
      %612 = vmatpush2.msra.mxu0 0.0
      %613 = vmatprep.subr.mxu0 0.0
      %614 = vmatpush2.msra.mxu0 0.0
      %615 = vmatprep.mubr.f32.mxu0 0.0
      %616 = vmatmul.mubr.f32.gmra.mxu0 %v542
      %v617 = vpop.f32.mrf.mxu0
      %v618 = vadd.f32 0.0, %v617
      %v619 = vpop.f32.mrf.mxu0
      %v620 = vadd.f32 0.0, %v619
      %621 = vdwg.mxu0
      %v622 = vadd.f32 %v618, %v620
      %623 = vadd.xlane.f32.xlu0 %v622
      %v624 = vpop.xlane.xlu0 %623
      %v625 = vrot.slane %v624, 4
      %v626 = vadd.f32 %v624, %v625
      %v627 = vrot.slane %v626, 2
      %v628 = vadd.f32 %v626, %v627
      %v629 = vrot.slane %v628, 1
      %v630 = vadd.f32 %v628, %v629
      %s631 = vtos %v630
      %v632 = vmul.f32 %v618, %v618
      %v633 = vmul.f32 %v620, %v620
      %v634 = vadd.f32 %v632, %v633
      %635 = vadd.xlane.f32.xlu0 %v634
      %v636 = vpop.xlane.xlu0 %635
      %v637 = vrot.slane %v636, 4
      %v638 = vadd.f32 %v636, %v637
      %v639 = vrot.slane %v638, 2
      %v640 = vadd.f32 %v638, %v639
      %v641 = vrot.slane %v640, 1
      %v642 = vadd.f32 %v640, %v641
      %s643 = vtos %v642
      %v644 = vrcp.pop 2048.0
      %s645 = vtos %v644
      %s646 = smul.f32 %s631, %s645
      %v647 = vrcp.pop 2048.0
      %s648 = vtos %v647
      %s649 = smul.f32 %s643, %s648
      %s650 = smul.f32 %s646, %s646
      %s651 = ssub.f32 %s649, %s650
      %v652 = vstv %s646
      %v653 = vsub.f32 %v618, %v652
      %v654 = vsub.f32 %v620, %v652
      %s655 = sadd.f32 %s651, 1e-05
      %v656 = vstv %s655
      %v657 = vrsqrt.pop %v656
      %s658 = vtos %v657
      %v659 = vstv %s658
      %v660 = vmul.f32 %v653, %v659
      %v661 = vmul.f32 %v654, %v659
      %v662 = vld [vmem:[%s3] sm:$0xff]
      %664 = vset.pattern.permute.xlu0 0
      %665 = vperm.xlu0 %664, %v662
      %v666 = vpop.permute.xlu0 %665
      %v668 = vmul.f32 %v660, %v666
      %v669 = vmul.f32 %v661, %v666
      %v670 = vld [vmem:[%s4] sm:$0xff]
      %672 = vset.pattern.permute.xlu0 0
      %673 = vperm.xlu0 %672, %v670
      %v674 = vpop.permute.xlu0 %673
      %v676 = vadd.f32 %v668, %v674
      %v677 = vadd.f32 %v669, %v674
      %v678 = vmul.f32 %v676, 0.70710677
      %v679 = vmul.f32 %v677, 0.70710677
      %v680 = vand.u32 2147483647, %v678
      %v681 = vand.u32 2147483647, %v679
      %v682 = vmul.f32 %v680, 0.3275911
      %v683 = vmul.f32 %v681, 0.3275911
      %v684 = vadd.f32 %v682, 1.0
      %v685 = vadd.f32 %v683, 1.0
      %v686 = vrcp.pop %v684
      %v687 = vmul.f32 1.0, %v686
      %v688 = vrcp.pop %v685
      %v689 = vmul.f32 1.0, %v688
      %v690 = vmul.f32 %v687, 1.0614054
      %v691 = vmul.f32 %v689, 1.0614054
      %v692 = vsub.f32 %v690, 1.4531521
      %v693 = vsub.f32 %v691, 1.4531521
      %v694 = vmul.f32 %v692, %v687
      %v695 = vmul.f32 %v693, %v689
      %v696 = vadd.f32 %v694, 1.4214138
      %v697 = vadd.f32 %v695, 1.4214138
      %v698 = vmul.f32 %v696, %v687
      %v699 = vmul.f32 %v697, %v689
      %v700 = vsub.f32 %v698, 0.28449672
      %v701 = vsub.f32 %v699, 0.28449672
      %v702 = vmul.f32 %v700, %v687
      %v703 = vmul.f32 %v701, %v689
      %v704 = vadd.f32 %v702, 0.2548296
      %v705 = vadd.f32 %v703, 0.2548296
      %v706 = vmul.f32 %v704, %v687
      %v707 = vmul.f32 %v705, %v689
      %v708 = vsub.f32 0.0, %v680
      %v709 = vsub.f32 0.0, %v681
      %v710 = vmul.f32 %v708, %v680
      %v711 = vmul.f32 %v709, %v681
      %v712 = vmul.f32 %v710, 1.442695
      %v713 = vpow.pop %v712
      %v714 = vmul.f32 %v711, 1.442695
      %v715 = vpow.pop %v714
      %v716 = vmul.f32 %v706, %v713
      %v717 = vmul.f32 %v707, %v715
      %v718 = vsub.f32 1.0, %v716
      %v719 = vsub.f32 1.0, %v717
      %vm720 = vcmp.ge.f32.partialorder %v678, 0.0
      %vm721 = vcmp.ge.f32.partialorder %v679, 0.0
      %v722 = vsub.f32 0.0, %v718
      %v723 = vsub.f32 0.0, %v719
      %v724 = vsel %vm720, %v718, %v722
      %v725 = vsel %vm721, %v719, %v723
      %v726 = vmul.f32 %v676, 0.5
      %v727 = vmul.f32 %v677, 0.5
      %v728 = vadd.f32 %v724, 1.0
      %v729 = vadd.f32 %v725, 1.0
      %v730 = vmul.f32 %v726, %v728
      %v731 = vmul.f32 %v727, %v729
      %v732 = vld [vmem:[%s5] sm:$0xff]
      %733 = vrot.lane.b32.xlu0 %v730, 17
      %v734 = vpop.permute.xlu0 %733
      %735 = vrot.lane.b32.xlu0 %v731, 17
      %v736 = vpop.permute.xlu0 %735
      %v737 = vsel %vm317, %v734, %v736
      %v738 = vsel %vm317, %v736, %v734
      %v739 = vld [vmem:[%s1] ss:$8 sm:$0x3]
      %v741 = vlaneseq
      %v742 = vshrl.u32 %v741, 7
      %v743 = vsub.s32 0, %v742
      %v744 = vrot.slane %v739, %v743
      %v745 = vlaneseq
      %v746 = vshrl.u32 %v745, 7
      %v747 = vsub.s32 1, %v746
      %v748 = vrot.slane %v739, %v747
      %v751 = vmul.f32 %v738, %v744
      %v752 = vmul.f32 %v737, %v748
      %753 = vst [vmem:[#allocation3] sm:$0xff] %v751
      %754 = vst [vmem:[#allocation3 + $0x8] sm:$0xff] %v752
      %755 = vrot.lane.b32.xlu0 %v730, 16
      %v756 = vpop.permute.xlu0 %755
      %757 = vrot.lane.b32.xlu0 %v731, 16
      %v758 = vpop.permute.xlu0 %757
      %v759 = vsel %vm340, %v756, %v758
      %v760 = vsel %vm340, %v758, %v756
      %v761 = vld [vmem:[%s343] ss:$8 sm:$0x3]
      %v763 = vlaneseq
      %v764 = vshrl.u32 %v763, 7
      %v765 = vsub.s32 0, %v764
      %v766 = vrot.slane %v761, %v765
      %v767 = vlaneseq
      %v768 = vshrl.u32 %v767, 7
      %v769 = vsub.s32 1, %v768
      %v770 = vrot.slane %v761, %v769
      %v773 = vmul.f32 %v760, %v766
      %v774 = vmul.f32 %v759, %v770
      %775 = vst [vmem:[#allocation3 + $0x10] sm:$0xff] %v773
      %776 = vst [vmem:[#allocation3 + $0x18] sm:$0xff] %v774
      %777 = vrot.lane.b32.xlu0 %v730, 15
      %v778 = vpop.permute.xlu0 %777
      %779 = vrot.lane.b32.xlu0 %v731, 15
      %v780 = vpop.permute.xlu0 %779
      %v781 = vsel %vm370, %v778, %v780
      %v782 = vsel %vm370, %v780, %v778
      %v783 = vld [vmem:[%s373] ss:$8 sm:$0x3]
      %v785 = vlaneseq
      %v786 = vshrl.u32 %v785, 7
      %v787 = vsub.s32 0, %v786
      %v788 = vrot.slane %v783, %v787
      %v789 = vlaneseq
      %v790 = vshrl.u32 %v789, 7
      %v791 = vsub.s32 1, %v790
      %v792 = vrot.slane %v783, %v791
      %v795 = vmul.f32 %v782, %v788
      %v796 = vmul.f32 %v781, %v792
      %797 = vst [vmem:[#allocation3 + $0x20] sm:$0xff] %v795
      %798 = vst [vmem:[#allocation3 + $0x28] sm:$0xff] %v796
      %799 = vrot.lane.b32.xlu0 %v730, 1
      %v800 = vpop.permute.xlu0 %799
      %801 = vrot.lane.b32.xlu0 %v731, 1
      %v802 = vpop.permute.xlu0 %801
      %v803 = vsel %vm394, %v800, %v802
      %v804 = vsel %vm394, %v802, %v800
      %v805 = vld [vmem:[%s397] ss:$8 sm:$0x3]
      %v807 = vlaneseq
      %v808 = vshrl.u32 %v807, 7
      %v809 = vsub.s32 0, %v808
      %v810 = vrot.slane %v805, %v809
      %v811 = vlaneseq
      %v812 = vshrl.u32 %v811, 7
      %v813 = vsub.s32 1, %v812
      %v814 = vrot.slane %v805, %v813
      %v817 = vmul.f32 %v804, %v810
      %v818 = vmul.f32 %v803, %v814
      %819 = vst [vmem:[#allocation3 + $0x30] sm:$0xff] %v817
      %820 = vst [vmem:[#allocation3 + $0x38] sm:$0xff] %v818
      %821 = vst [vmem:[#allocation3 + $0x40] sm:$0xff] %v730
      %822 = vst [vmem:[#allocation3 + $0x48] sm:$0xff] %v731
      %823 = vrot.lane.b32.xlu0 %v730, 127
      %v824 = vpop.permute.xlu0 %823
      %825 = vrot.lane.b32.xlu0 %v731, 127
      %v826 = vpop.permute.xlu0 %825
      %v827 = vsel %vm426, %v824, %v826
      %v828 = vsel %vm426, %v826, %v824
      %v829 = vld [vmem:[%s429] ss:$8 sm:$0x3]
      %v831 = vlaneseq
      %v832 = vshrl.u32 %v831, 7
      %v833 = vsub.s32 0, %v832
      %v834 = vrot.slane %v829, %v833
      %v835 = vlaneseq
      %v836 = vshrl.u32 %v835, 7
      %v837 = vsub.s32 1, %v836
      %v838 = vrot.slane %v829, %v837
      %v841 = vmul.f32 %v827, %v834
      %v842 = vmul.f32 %v828, %v838
      %843 = vst [vmem:[#allocation3 + $0x50] sm:$0xff] %v841
      %844 = vst [vmem:[#allocation3 + $0x58] sm:$0xff] %v842
      %845 = vrot.lane.b32.xlu0 %v730, 113
      %v846 = vpop.permute.xlu0 %845
      %847 = vrot.lane.b32.xlu0 %v731, 113
      %v848 = vpop.permute.xlu0 %847
      %v849 = vsel %vm456, %v846, %v848
      %v850 = vsel %vm456, %v848, %v846
      %v851 = vld [vmem:[%s459] ss:$8 sm:$0x3]
      %v853 = vlaneseq
      %v854 = vshrl.u32 %v853, 7
      %v855 = vsub.s32 0, %v854
      %v856 = vrot.slane %v851, %v855
      %v857 = vlaneseq
      %v858 = vshrl.u32 %v857, 7
      %v859 = vsub.s32 1, %v858
      %v860 = vrot.slane %v851, %v859
      %v863 = vmul.f32 %v849, %v856
      %v864 = vmul.f32 %v850, %v860
      %865 = vst [vmem:[#allocation3 + $0x60] sm:$0xff] %v863
      %866 = vst [vmem:[#allocation3 + $0x68] sm:$0xff] %v864
      %867 = vrot.lane.b32.xlu0 %v730, 112
      %v868 = vpop.permute.xlu0 %867
      %869 = vrot.lane.b32.xlu0 %v731, 112
      %v870 = vpop.permute.xlu0 %869
      %v871 = vsel %vm480, %v868, %v870
      %v872 = vsel %vm480, %v870, %v868
      %v873 = vld [vmem:[%s483] ss:$8 sm:$0x3]
      %v875 = vlaneseq
      %v876 = vshrl.u32 %v875, 7
      %v877 = vsub.s32 0, %v876
      %v878 = vrot.slane %v873, %v877
      %v879 = vlaneseq
      %v880 = vshrl.u32 %v879, 7
      %v881 = vsub.s32 1, %v880
      %v882 = vrot.slane %v873, %v881
      %v885 = vmul.f32 %v871, %v878
      %v886 = vmul.f32 %v872, %v882
      %887 = vst [vmem:[#allocation3 + $0x70] sm:$0xff] %v885
      %888 = vst [vmem:[#allocation3 + $0x78] sm:$0xff] %v886
      %889 = vrot.lane.b32.xlu0 %v730, 111
      %v890 = vpop.permute.xlu0 %889
      %891 = vrot.lane.b32.xlu0 %v731, 111
      %v892 = vpop.permute.xlu0 %891
      %v893 = vsel %vm510, %v890, %v892
      %v894 = vsel %vm510, %v892, %v890
      %v895 = vld [vmem:[%s513] ss:$8 sm:$0x3]
      %v897 = vlaneseq
      %v898 = vshrl.u32 %v897, 7
      %v899 = vsub.s32 0, %v898
      %v900 = vrot.slane %v895, %v899
      %v901 = vlaneseq
      %v902 = vshrl.u32 %v901, 7
      %v903 = vsub.s32 1, %v902
      %v904 = vrot.slane %v895, %v903
      %v907 = vmul.f32 %v893, %v900
      %v908 = vmul.f32 %v894, %v904
      %909 = vst [vmem:[#allocation3 + $0x80] sm:$0xff] %v907
      %910 = vst [vmem:[#allocation3 + $0x88] sm:$0xff] %v908
      %v911 = vld [vmem:[#allocation3] sm:$0xff]
      %v912 = vld [vmem:[#allocation3 + $0x8] sm:$0xff]
      %v913 = vld [vmem:[#allocation3 + $0x10] sm:$0xff]
      %v914 = vld [vmem:[#allocation3 + $0x18] sm:$0xff]
      %v915 = vld [vmem:[#allocation3 + $0x20] sm:$0xff]
      %v916 = vld [vmem:[#allocation3 + $0x28] sm:$0xff]
      %v917 = vld [vmem:[#allocation3 + $0x30] sm:$0xff]
      %v918 = vld [vmem:[#allocation3 + $0x38] sm:$0xff]
      %v919 = vld [vmem:[#allocation3 + $0x40] sm:$0xff]
      %v920 = vld [vmem:[#allocation3 + $0x48] sm:$0xff]
      %v921 = vld [vmem:[#allocation3 + $0x50] sm:$0xff]
      %v922 = vld [vmem:[#allocation3 + $0x58] sm:$0xff]
      %v923 = vld [vmem:[#allocation3 + $0x60] sm:$0xff]
      %v924 = vld [vmem:[#allocation3 + $0x68] sm:$0xff]
      %v925 = vld [vmem:[#allocation3 + $0x70] sm:$0xff]
      %v926 = vld [vmem:[#allocation3 + $0x78] sm:$0xff]
      %v927 = vld [vmem:[#allocation3 + $0x80] sm:$0xff]
      %v928 = vld [vmem:[#allocation3 + $0x88] sm:$0xff]
      %vm929 = vcmask 588800
      %v931 = vsel %vm929, %v732, 0
      %933 = vmatprep.subr.mxu0 0.0
      %934 = vmatpush1.msra.mxu0 0.0
      %935 = vmatprep.subr.mxu0 0.0
      %936 = vmatpush1.msra.mxu0 0.0
      %937 = vmatprep.subr.mxu0 0.0
      %938 = vmatpush1.msra.mxu0 0.0
      %939 = vmatprep.subr.mxu0 0.0
      %940 = vmatpush1.msra.mxu0 0.0
      %941 = vmatprep.subr.mxu0 0.0
      %942 = vmatpush1.msra.mxu0 0.0
      %943 = vmatprep.subr.mxu0 0.0
      %944 = vmatpush1.msra.mxu0 0.0
      %945 = vmatprep.subr.mxu0 0.0
      %946 = vmatpush1.msra.mxu0 0.0
      %947 = vmatprep.subr.mxu0 %v928
      %948 = vmatpush1.msra.mxu0 %v927
      %949 = vmatprep.subr.mxu0 %v926
      %950 = vmatpush1.msra.mxu0 %v925
      %951 = vmatprep.subr.mxu0 %v924
      %952 = vmatpush1.msra.mxu0 %v923
      %953 = vmatprep.subr.mxu0 %v922
      %954 = vmatpush1.msra.mxu0 %v921
      %955 = vmatprep.subr.mxu0 %v920
      %956 = vmatpush1.msra.mxu0 %v919
      %957 = vmatprep.subr.mxu0 %v918
      %958 = vmatpush1.msra.mxu0 %v917
      %959 = vmatprep.subr.mxu0 %v916
      %960 = vmatpush1.msra.mxu0 %v915
      %961 = vmatprep.subr.mxu0 %v914
      %962 = vmatpush1.msra.mxu0 %v913
      %963 = vmatprep.subr.mxu0 %v912
      %964 = vmatpush1.msra.mxu0 %v911
      %965 = vmatprep.subr.mxu0 0.0
      %966 = vmatpush2.msra.mxu0 0.0
      %967 = vmatprep.subr.mxu0 0.0
      %968 = vmatpush2.msra.mxu0 0.0
      %969 = vmatprep.subr.mxu0 0.0
      %970 = vmatpush2.msra.mxu0 0.0
      %971 = vmatprep.subr.mxu0 0.0
      %972 = vmatpush2.msra.mxu0 0.0
      %973 = vmatprep.subr.mxu0 0.0
      %974 = vmatpush2.msra.mxu0 0.0
      %975 = vmatprep.subr.mxu0 0.0
      %976 = vmatpush2.msra.mxu0 0.0
      %977 = vmatprep.subr.mxu0 0.0
      %978 = vmatpush2.msra.mxu0 0.0
      %979 = vmatprep.subr.mxu0 0.0
      %980 = vmatpush2.msra.mxu0 0.0
      %981 = vmatprep.subr.mxu0 0.0
      %982 = vmatpush2.msra.mxu0 0.0
      %983 = vmatprep.subr.mxu0 0.0
      %984 = vmatpush2.msra.mxu0 0.0
      %985 = vmatprep.subr.mxu0 0.0
      %986 = vmatpush2.msra.mxu0 0.0
      %987 = vmatprep.subr.mxu0 0.0
      %988 = vmatpush2.msra.mxu0 0.0
      %989 = vmatprep.subr.mxu0 0.0
      %990 = vmatpush2.msra.mxu0 0.0
      %991 = vmatprep.subr.mxu0 0.0
      %992 = vmatpush2.msra.mxu0 0.0
      %993 = vmatprep.subr.mxu0 0.0
      %994 = vmatpush2.msra.mxu0 0.0
      %995 = vmatprep.subr.mxu0 0.0
      %996 = vmatpush2.msra.mxu0 0.0
      %997 = vmatprep.mubr.f32.mxu0 0.0
      %998 = vmatmul.mubr.f32.gmra.mxu0 %v931
      %v999 = vpop.f32.mrf.mxu0
      %v1000 = vadd.f32 0.0, %v999
      %v1001 = vpop.f32.mrf.mxu0
      %v1002 = vadd.f32 0.0, %v1001
      %1003 = vdwg.mxu0
      %v1004 = vadd.f32 %v1000, %v1002
      %1005 = vadd.xlane.f32.xlu0 %v1004
      %v1006 = vpop.xlane.xlu0 %1005
      %v1007 = vrot.slane %v1006, 4
      %v1008 = vadd.f32 %v1006, %v1007
      %v1009 = vrot.slane %v1008, 2
      %v1010 = vadd.f32 %v1008, %v1009
      %v1011 = vrot.slane %v1010, 1
      %v1012 = vadd.f32 %v1010, %v1011
      %s1013 = vtos %v1012
      %v1014 = vmul.f32 %v1000, %v1000
      %v1015 = vmul.f32 %v1002, %v1002
      %v1016 = vadd.f32 %v1014, %v1015
      %1017 = vadd.xlane.f32.xlu0 %v1016
      %v1018 = vpop.xlane.xlu0 %1017
      %v1019 = vrot.slane %v1018, 4
      %v1020 = vadd.f32 %v1018, %v1019
      %v1021 = vrot.slane %v1020, 2
      %v1022 = vadd.f32 %v1020, %v1021
      %v1023 = vrot.slane %v1022, 1
      %v1024 = vadd.f32 %v1022, %v1023
      %s1025 = vtos %v1024
      %v1026 = vrcp.pop 2048.0
      %s1027 = vtos %v1026
      %s1028 = smul.f32 %s1013, %s1027
      %v1029 = vrcp.pop 2048.0
      %s1030 = vtos %v1029
      %s1031 = smul.f32 %s1025, %s1030
      %s1032 = smul.f32 %s1028, %s1028
      %s1033 = ssub.f32 %s1031, %s1032
      %v1034 = vstv %s1028
      %v1035 = vsub.f32 %v1000, %v1034
      %v1036 = vsub.f32 %v1002, %v1034
      %s1037 = sadd.f32 %s1033, 1e-05
      %v1038 = vstv %s1037
      %v1039 = vrsqrt.pop %v1038
      %s1040 = vtos %v1039
      %v1041 = vstv %s1040
      %v1042 = vmul.f32 %v1035, %v1041
      %v1043 = vmul.f32 %v1036, %v1041
      %v1044 = vld [vmem:[%s6] sm:$0xff]
      %1046 = vset.pattern.permute.xlu0 0
      %1047 = vperm.xlu0 %1046, %v1044
      %v1048 = vpop.permute.xlu0 %1047
      %v1050 = vmul.f32 %v1042, %v1048
      %v1051 = vmul.f32 %v1043, %v1048
      %v1052 = vld [vmem:[%s7] sm:$0xff]
      %1054 = vset.pattern.permute.xlu0 0
      %1055 = vperm.xlu0 %1054, %v1052
      %v1056 = vpop.permute.xlu0 %1055
      %v1058 = vadd.f32 %v1050, %v1056
      %v1059 = vadd.f32 %v1051, %v1056
      %1060 = vst [vmem:[%s305] sm:$0xff] %v1058
      %1061 = vst [vmem:[%s305 + $0x8] sm:$0xff] %v1059
      %p1062 = scmp.lt.s32.totalorder %s19, 1
      %s1063 = scalar_select %p1062, %s19, 1
      %s1064 = smul.addr %s1063, 2
      %s1065 = smul.addr %s1064, 8
      %s1066 = scalar_lea.vmem %s8, %s1065
      // Predicated region
      $region53: #{forward.1} parent=51 // pred_check
        %p1067 = pneg %p210
      $region54: #{forward.1} parent=51 // pred_check_branch
        %1069 = sbr.rel (%p1067) target = $region56
      $region55: #{forward.1} parent=51 // pred_region
        _
      $region56: #{forward.1} parent=51 // pred_fallthru
        _
    $region52: #{forward.1} parent=5 // pred_fallthru
      _
    %p1070 = scmp.le.s32.totalorder 2, %s14
    // Predicated region
    $region57: #{forward.1} parent=5 // pred_check
      %p1071 = pneg %p1070
    $region58: #{forward.1} parent=5 // pred_check_branch
      %1073 = sbr.rel (%p1071) target = $region60
    $region59: #{forward.1} parent=5 // pred_region
      %s1074 = ssub.s32 %s14, 2
      // Predicated region
      $region61: #{forward.1} parent=59 // pred_check
        %p1075 = pneg %p216
      $region62: #{forward.1} parent=59 // pred_check_branch
        %1077 = sbr.rel (%p1075) target = $region64
      $region63: #{forward.1} parent=59 // pred_region
        %p1078 = scmp.lt.s32.totalorder %s20, 1
        %s1079 = scalar_select %p1078, %s20, 1
        %s1080 = smul.addr %s1079, 2
        %s1081 = smul.addr %s1080, 8
        %s1082 = scalar_lea.vmem %s8, %s1081
      $region64: #{forward.1} parent=59 // pred_fallthru
        _
    $region60: #{forward.1} parent=5 // pred_fallthru
      _
  $region6: #{forward.1} parent=0 // loop_footer
    %s18 = sadd.s32 1, %s14
  $region7: #{forward.1} parent=0 // loop_footer_branch
    %13 = sbr.rel target = $region3
  $region8: #{forward.1} parent=0 // loop_exit
    _

</llo_original>
